<compile_context>
chip_gen: v7x
topology: tpu7x:2x2x1
jax: 0.10.0
libtpu: 0.0.40
codegen_flags: <defaults>
</compile_context>

<pallas_src>
import functools

import numpy as np

import jax
import jax.numpy as jnp
from jax import lax
from jax.experimental import pallas as pl
from jax.experimental.pallas import tpu as pltpu

EPS_LN = 1e-5       # torch.nn.LayerNorm default eps
EPS_NORM = 1e-12    # F.normalize default eps


# ---------------------------------------------------------------- helpers ---

def _layer_norm(x, gamma, beta):
    mu = jnp.mean(x, axis=-1, keepdims=True)
    xc = x - mu
    var = jnp.mean(xc * xc, axis=-1, keepdims=True)
    return xc * lax.rsqrt(var + EPS_LN) * gamma + beta


def _erf(x):
    # Abramowitz & Stegun 7.1.26 polynomial erf, |abs err| <= 1.5e-7.
    # Kept (instead of lax.erf) for guaranteed Mosaic lowering of exact GELU.
    a1, a2, a3, a4, a5 = 0.254829592, -0.284496736, 1.421413741, -1.453152027, 1.061405429
    p = 0.3275911
    s = jnp.where(x >= 0.0, 1.0, -1.0)
    ax = jnp.abs(x)
    t = 1.0 / (1.0 + p * ax)
    poly = ((((a5 * t + a4) * t + a3) * t + a2) * t + a1) * t
    return s * (1.0 - poly * jnp.exp(-ax * ax))


def _gelu_exact(x):
    # PyTorch nn.GELU() default (erf-based).
    return 0.5 * x * (1.0 + _erf(x * 0.7071067811865476))


def _make_qscat(N, C, num_heads):
    """0/1 scatter matrix realizing the reference's scrambled reshape.

    out_cn[r', n] = (attn @ v)[h, d, n] with r' = h*hd + d.  The reference's
    (attn @ v).transpose(1, 2).reshape(B, N, C) places that element at row
    n' = (d*H + h) * (N//C) + n//C, column c' = n % C (requires N % C == 0).
    With chunk_i = out_cn[:, i*C:(i+1)*C]:  xo = sum_i qscat[:, i*C:(i+1)*C] @ chunk_i.
    """
    hd = C // num_heads
    m = N // C
    q = np.zeros((N, N), np.float32)
    for r in range(C):
        h, d = r // hd, r % hd
        base = (d * num_heads + h) * m
        for i in range(m):
            q[base + i, i * C + r] = 1.0
    return jnp.asarray(q).astype(jnp.bfloat16)   # exact 0/1 in bf16


# ----------------------------------------------------------------- kernel ---

def block_kernel(x_ref, g1_ref, be1_ref, wqkv_ref, bqkv_ref, qscat_ref,
                 wp_ref, bp_ref, g2_ref, be2_ref, w1_ref, b1_ref,
                 w2_ref, b2_ref, o_ref, *, num_heads, scale):
    """One batch element: the whole ChannelTransformerBlock, fused."""
    x = x_ref[0]                                   # (N, C) f32
    N, C = x.shape
    hd = C // num_heads
    m = N // C

    # ---- norm1 + fused QKV ----
    xn = _layer_norm(x, g1_ref[...], be1_ref[...])
    qkv = jnp.dot(xn.astype(jnp.bfloat16), wqkv_ref[...],
                  preferred_element_type=jnp.float32) + bqkv_ref[...]   # (N, 3C) f32
    q = qkv[:, :C]
    k = qkv[:, C:2 * C]
    v = qkv[:, 2 * C:].astype(jnp.bfloat16)

    # ---- channel attention ----
    # F.normalize over tokens per channel column; 1/max(||.||, eps) == rsqrt(max(ss, eps^2)).
    k_inv = lax.rsqrt(jnp.maximum(jnp.sum(k * k, axis=0, keepdims=True),
                                  EPS_NORM * EPS_NORM))                 # (1, C)
    q_col = scale * lax.rsqrt(jnp.maximum(jnp.sum(q * q, axis=0, keepdims=True),
                                          EPS_NORM * EPS_NORM))         # (1, C)
    kn = (k * k_inv).astype(jnp.bfloat16)

    # Head-batched logits: (C, C) = kn^T @ q (contraction over tokens); q's
    # normalization + qk scale applied afterwards as a column scaling.
    logits = lax.dot_general(kn, q.astype(jnp.bfloat16),
                             (((0,), (0,)), ((), ())),
                             preferred_element_type=jnp.float32)
    logits = logits * q_col

    # Block-diagonal same-head mask built in-kernel (float floor avoids any
    # reliance on vector integer division).
    rf = lax.broadcasted_iota(jnp.int32, (C, C), 0).astype(jnp.float32)
    cf = lax.broadcasted_iota(jnp.int32, (C, C), 1).astype(jnp.float32)
    inv_hd = 1.0 / float(hd)
    same_head = jnp.floor((rf + 0.5) * inv_hd) == jnp.floor((cf + 0.5) * inv_hd)

    # |valid logits| <= scale <= 1 -> no max-subtraction needed.
    p = jnp.where(same_head, jnp.exp(logits), 0.0)
    p = p * pl.reciprocal(jnp.sum(p, axis=-1, keepdims=True), approx=True)

    # (C, N) = p @ v^T (contraction over the original channel axis):
    # out_cn[h*hd + d, n] = (attn @ v)[h, d, n].
    out_cn = lax.dot_general(p.astype(jnp.bfloat16), v,
                             (((1,), (1,)), ((), ())),
                             preferred_element_type=jnp.float32)        # (C, N)

    # Reference scramble (transpose(1,2).reshape(B,N,C)) via 0/1 scatter
    # matmuls -> token-major (N, C), exact selection of bf16-rounded values.
    qs = qscat_ref[...]                                                 # (N, N) bf16
    parts = [jnp.dot(qs[:, i * C:(i + 1) * C],
                     out_cn[:, i * C:(i + 1) * C].astype(jnp.bfloat16),
                     preferred_element_type=jnp.float32)
             for i in range(m)]
    xo = parts[0]
    for t in parts[1:]:
        xo = xo + t                                                     # (N, C) f32

    # ---- proj + residual (drop_path = identity) ----
    a = jnp.dot(xo.astype(jnp.bfloat16), wp_ref[...],
                preferred_element_type=jnp.float32) + bp_ref[...]
    x1 = x + a

    # ---- norm2 + MLP + residual ----
    xn2 = _layer_norm(x1, g2_ref[...], be2_ref[...])
    h = jnp.dot(xn2.astype(jnp.bfloat16), w1_ref[...],
                preferred_element_type=jnp.float32) + b1_ref[...]
    h = _gelu_exact(h)
    mlp = jnp.dot(h.astype(jnp.bfloat16), w2_ref[...],
                  preferred_element_type=jnp.float32) + b2_ref[...]
    o_ref[0] = (x1 + mlp).astype(o_ref.dtype)


# ------------------------------------------------------------- wrappers ----

def block_call(x, p, *, num_heads, scale):
    B, N, C = x.shape
    hidden = p["w1"].shape[1]
    kern = functools.partial(block_kernel, num_heads=num_heads, scale=scale)
    const = lambda b: (0, 0)
    return pl.pallas_call(
        kern,
        out_shape=jax.ShapeDtypeStruct((B, N, C), jnp.float32),
        grid_spec=pltpu.PrefetchScalarGridSpec(
            num_scalar_prefetch=0,
            grid=(B,),
            in_specs=[
                pl.BlockSpec((1, N, C), lambda b: (b, 0, 0)),   # x
                pl.BlockSpec((1, C), const),                    # g1
                pl.BlockSpec((1, C), const),                    # be1
                pl.BlockSpec((C, 3 * C), const),                # wqkv (bf16)
                pl.BlockSpec((1, 3 * C), const),                # bqkv
                pl.BlockSpec((N, N), const),                    # qscat (bf16)
                pl.BlockSpec((C, C), const),                    # wp (bf16)
                pl.BlockSpec((1, C), const),                    # bp
                pl.BlockSpec((1, C), const),                    # g2
                pl.BlockSpec((1, C), const),                    # be2
                pl.BlockSpec((C, hidden), const),               # w1 (bf16)
                pl.BlockSpec((1, hidden), const),               # b1
                pl.BlockSpec((hidden, C), const),               # w2 (bf16)
                pl.BlockSpec((1, C), const),                    # b2
            ],
            out_specs=pl.BlockSpec((1, N, C), lambda b: (b, 0, 0)),
        ),
        compiler_params=pltpu.CompilerParams(dimension_semantics=("parallel",)),
    )(x, p["g1"], p["be1"], p["wqkv"], p["bqkv"], p["qscat"],
      p["wp"], p["bp"], p["g2"], p["be2"],
      p["w1"], p["b1"], p["w2"], p["b2"])


def prepare_layer_params(params, num_heads, N):
    """Hoisted out of jit: bf16 weight casts + precomputed scatter matrix."""
    prepared = []
    for p in params:
        C = p["wqkv"].shape[0]
        # TODO(synk): general L with L % C != 0 (scramble rows straddle out_cn
        # rows) would need a gather path; not needed for these shapes.
        assert N % C == 0, "fused scramble path requires L % C == 0"
        prepared.append({
            "g1": p["g1"], "be1": p["be1"],
            "wqkv": p["wqkv"].astype(jnp.bfloat16),
            "bqkv": p["bqkv"],
            "qscat": _make_qscat(N, C, num_heads),
            "wp": p["wp"].astype(jnp.bfloat16), "bp": p["bp"],
            "g2": p["g2"], "be2": p["be2"],
            "w1": p["w1"].astype(jnp.bfloat16), "b1": p["b1"],
            "w2": p["w2"].astype(jnp.bfloat16), "b2": p["b2"],
        })
    return prepared


def channel_transformer_layer(x, prepared_params, num_heads):
    """ChannelTransformerLayer.forward: stacked blocks, downsample=None."""
    B, N, C = x.shape
    hd = C // num_heads
    scale = hd ** (-0.5)
    for p in prepared_params:
        x = block_call(x, p, num_heads=num_heads, scale=scale)
    return x


# -------------------------------------------------------- reference (JAX) --

def _ln_ref(x, g, b):
    mu = jnp.mean(x, axis=-1, keepdims=True)
    var = jnp.mean((x - mu) ** 2, axis=-1, keepdims=True)
    return (x - mu) / jnp.sqrt(var + EPS_LN) * g + b


def reference_layer(x, params, num_heads):
    B, N, C = x.shape
    hd = C // num_heads
    scale = hd ** (-0.5)
    for p in params:
        sc = x
        xn = _ln_ref(x, p["g1"], p["be1"])
        qkv = xn @ p["wqkv"] + p["bqkv"]
        q, k, v = qkv[..., :C], qkv[..., C:2 * C], qkv[..., 2 * C:]

        def heads_T(t):
            t = t.reshape(B, N, num_heads, hd).transpose(0, 2, 1, 3)   # (B,H,N,hd)
            return jnp.swapaxes(t, -2, -1)                             # (B,H,hd,N)

        q, k, v = heads_T(q), heads_T(k), heads_T(v)
        q = q / jnp.maximum(jnp.linalg.norm(q, axis=-1, keepdims=True), EPS_NORM)
        k = k / jnp.maximum(jnp.linalg.norm(k, axis=-1, keepdims=True), EPS_NORM)
        attn = jnp.einsum("bhdn,bhen->bhde", k, q) * scale
        attn = jax.nn.softmax(attn, axis=-1)
        av = jnp.einsum("bhde,bhen->bhdn", attn, v)                    # (B,H,hd,N)
        av = jnp.swapaxes(av, 1, 2).reshape(B, N, C)
        xo = av @ p["wp"] + p["bp"]
        x1 = sc + xo
        xn2 = _ln_ref(x1, p["g2"], p["be2"])
        h = jax.nn.gelu(xn2 @ p["w1"] + p["b1"], approximate=False)
        x = x1 + h @ p["w2"] + p["b2"]
    return x


# ---------------------------------------------------------------- params ---

def init_block_params(key, C, hidden):
    ks = jax.random.split(key, 8)

    def w(k, shape):
        return jax.random.normal(k, shape, jnp.float32) * 0.02

    return {
        "g1": jnp.ones((1, C), jnp.float32),
        "be1": jnp.zeros((1, C), jnp.float32),
        "wqkv": w(ks[0], (C, 3 * C)),     # (in, out): x @ W
        "bqkv": w(ks[1], (1, 3 * C)),
        "wp": w(ks[2], (C, C)),
        "bp": w(ks[3], (1, C)),
        "g2": jnp.ones((1, C), jnp.float32),
        "be2": jnp.zeros((1, C), jnp.float32),
        "w1": w(ks[4], (C, hidden)),
        "b1": w(ks[5], (1, hidden)),
        "w2": w(ks[6], (hidden, C)),
        "b2": w(ks[7], (1, C)),
    }


# ------------------------------------------------------------------ main ---

if __name__ == "__main__":
    B = 2
    C = 32              # dim
    num_heads = 4       # head_dim = 8
    depth = 2
    Hres, Wres = 8, 8   # input_resolution
    N = Hres * Wres     # L = H * W
    mlp_ratio = 4.0
    hidden = int(C * mlp_ratio)

    key = jax.random.PRNGKey(0)
    kx, kp = jax.random.split(key)
    x = jax.random.normal(kx, (B, N, C), jnp.float32)
    raw_params = [init_block_params(k, C, hidden) for k in jax.random.split(kp, depth)]

    prepared = prepare_layer_params(raw_params, num_heads, N)   # outside jit
    run = jax.jit(functools.partial(channel_transformer_layer, num_heads=num_heads))
    out = jax.block_until_ready(run(x, prepared))

    ref = reference_layer(x, raw_params, num_heads)
    assert out.shape == (B, N, C)
    max_err = float(jnp.max(jnp.abs(out - ref)))
    # bf16 MXU operands + approx reciprocal in softmax (f32 accumulation/elementwise)
    assert jnp.allclose(out, ref, atol=2e-2, rtol=2e-2), f"max abs err {max_err}"

    print("KERNEL_OK")
</pallas_src>

<mosaic_0001>
module attributes {stable_mosaic.version = 11 : i64} {
  func.func @block_kernel(%arg0: i32, %arg1: memref<1x64x32xf32, #tpu.memory_space<vmem>>, %arg2: memref<1x32xf32, #tpu.memory_space<vmem>>, %arg3: memref<1x32xf32, #tpu.memory_space<vmem>>, %arg4: memref<32x96xbf16, #tpu.memory_space<vmem>>, %arg5: memref<1x96xf32, #tpu.memory_space<vmem>>, %arg6: memref<64x64xbf16, #tpu.memory_space<vmem>>, %arg7: memref<32x32xbf16, #tpu.memory_space<vmem>>, %arg8: memref<1x32xf32, #tpu.memory_space<vmem>>, %arg9: memref<1x32xf32, #tpu.memory_space<vmem>>, %arg10: memref<1x32xf32, #tpu.memory_space<vmem>>, %arg11: memref<32x128xbf16, #tpu.memory_space<vmem>>, %arg12: memref<1x128xf32, #tpu.memory_space<vmem>>, %arg13: memref<128x32xbf16, #tpu.memory_space<vmem>>, %arg14: memref<1x32xf32, #tpu.memory_space<vmem>>, %arg15: memref<1x64x32xf32, #tpu.memory_space<vmem>>) attributes {dimension_semantics = [#tpu.dimension_semantics<parallel>], iteration_bounds = array<i64: 2>, scalar_prefetch = 0 : i64, scratch_operands = 0 : i64, tpu.core_type = #tpu.core_type<tc>, window_params = [{transform_indices = @transform_0, window_bounds = array<i64: 1, 64, 32>}, {pipeline_mode = #tpu.pipeline_mode<synchronous>, transform_indices = @transform_1, window_bounds = array<i64: 1, 32>}, {pipeline_mode = #tpu.pipeline_mode<synchronous>, transform_indices = @transform_2, window_bounds = array<i64: 1, 32>}, {pipeline_mode = #tpu.pipeline_mode<synchronous>, transform_indices = @transform_3, window_bounds = array<i64: 32, 96>}, {pipeline_mode = #tpu.pipeline_mode<synchronous>, transform_indices = @transform_4, window_bounds = array<i64: 1, 96>}, {pipeline_mode = #tpu.pipeline_mode<synchronous>, transform_indices = @transform_5, window_bounds = array<i64: 64, 64>}, {pipeline_mode = #tpu.pipeline_mode<synchronous>, transform_indices = @transform_6, window_bounds = array<i64: 32, 32>}, {pipeline_mode = #tpu.pipeline_mode<synchronous>, transform_indices = @transform_7, window_bounds = array<i64: 1, 32>}, {pipeline_mode = #tpu.pipeline_mode<synchronous>, transform_indices = @transform_8, window_bounds = array<i64: 1, 32>}, {pipeline_mode = #tpu.pipeline_mode<synchronous>, transform_indices = @transform_9, window_bounds = array<i64: 1, 32>}, {pipeline_mode = #tpu.pipeline_mode<synchronous>, transform_indices = @transform_10, window_bounds = array<i64: 32, 128>}, {pipeline_mode = #tpu.pipeline_mode<synchronous>, transform_indices = @transform_11, window_bounds = array<i64: 1, 128>}, {pipeline_mode = #tpu.pipeline_mode<synchronous>, transform_indices = @transform_12, window_bounds = array<i64: 128, 32>}, {pipeline_mode = #tpu.pipeline_mode<synchronous>, transform_indices = @transform_13, window_bounds = array<i64: 1, 32>}, {transform_indices = @transform_14, window_bounds = array<i64: 1, 64, 32>}]} {
    %c0 = arith.constant 0 : index
    %c0_0 = arith.constant 0 : index
    %c0_1 = arith.constant 0 : index
    %0 = vector.load %arg1[%c0, %c0_0, %c0_1] : memref<1x64x32xf32, #tpu.memory_space<vmem>>, vector<1x64x32xf32>
    %1 = vector.shape_cast %0 : vector<1x64x32xf32> to vector<64x32xf32>
    %c0_2 = arith.constant 0 : index
    %c0_3 = arith.constant 0 : index
    %2 = vector.load %arg2[%c0_2, %c0_3] : memref<1x32xf32, #tpu.memory_space<vmem>>, vector<1x32xf32>
    %c0_4 = arith.constant 0 : index
    %c0_5 = arith.constant 0 : index
    %3 = vector.load %arg3[%c0_4, %c0_5] : memref<1x32xf32, #tpu.memory_space<vmem>>, vector<1x32xf32>
    %cst = arith.constant dense<0.000000e+00> : vector<64xf32>
    %4 = vector.multi_reduction <add>, %1, %cst [1] : vector<64x32xf32> to vector<64xf32>
    %5 = vector.shape_cast %4 : vector<64xf32> to vector<64x1xf32>
    %cst_6 = arith.constant 3.200000e+01 : f32
    %6 = vector.broadcast %cst_6 : f32 to vector<64x1xf32>
    %7 = arith.divf %5, %6 : vector<64x1xf32>
    %8 = vector.broadcast %7 : vector<64x1xf32> to vector<64x32xf32>
    %9 = arith.subf %1, %8 : vector<64x32xf32>
    %10 = arith.mulf %9, %9 : vector<64x32xf32>
    %cst_7 = arith.constant dense<0.000000e+00> : vector<64xf32>
    %11 = vector.multi_reduction <add>, %10, %cst_7 [1] : vector<64x32xf32> to vector<64xf32>
    %12 = vector.shape_cast %11 : vector<64xf32> to vector<64x1xf32>
    %cst_8 = arith.constant 3.200000e+01 : f32
    %13 = vector.broadcast %cst_8 : f32 to vector<64x1xf32>
    %14 = arith.divf %12, %13 : vector<64x1xf32>
    %cst_9 = arith.constant 9.99999974E-6 : f32
    %15 = vector.broadcast %cst_9 : f32 to vector<64x1xf32>
    %16 = arith.addf %14, %15 : vector<64x1xf32>
    %17 = math.rsqrt %16 : vector<64x1xf32>
    %18 = vector.broadcast %17 : vector<64x1xf32> to vector<64x32xf32>
    %19 = arith.mulf %9, %18 : vector<64x32xf32>
    %20 = vector.broadcast %2 : vector<1x32xf32> to vector<64x32xf32>
    %21 = arith.mulf %19, %20 : vector<64x32xf32>
    %22 = vector.broadcast %3 : vector<1x32xf32> to vector<64x32xf32>
    %23 = arith.addf %21, %22 : vector<64x32xf32>
    %24 = arith.truncf %23 : vector<64x32xf32> to vector<64x32xbf16>
    %c0_10 = arith.constant 0 : index
    %c0_11 = arith.constant 0 : index
    %25 = vector.load %arg4[%c0_10, %c0_11] : memref<32x96xbf16, #tpu.memory_space<vmem>>, vector<32x96xbf16>
    %cst_12 = arith.constant dense<0.000000e+00> : vector<64x96xf32>
    %26 = tpu.matmul %24, %25, %cst_12 {dimension_numbers = #tpu.dot_dimension_numbers<[1], [0], [0], [1], [0, 0, 1, 1], [], []>} : vector<64x32xbf16>, vector<32x96xbf16>, vector<64x96xf32> -> vector<64x96xf32>
    %c0_13 = arith.constant 0 : index
    %c0_14 = arith.constant 0 : index
    %27 = vector.load %arg5[%c0_13, %c0_14] : memref<1x96xf32, #tpu.memory_space<vmem>>, vector<1x96xf32>
    %28 = vector.broadcast %27 : vector<1x96xf32> to vector<64x96xf32>
    %29 = arith.addf %26, %28 : vector<64x96xf32>
    %30 = vector.extract_strided_slice %29 {offsets = [0, 0], sizes = [64, 32], strides = [1, 1]} : vector<64x96xf32> to vector<64x32xf32>
    %31 = vector.extract_strided_slice %29 {offsets = [0, 32], sizes = [64, 32], strides = [1, 1]} : vector<64x96xf32> to vector<64x32xf32>
    %32 = vector.extract_strided_slice %29 {offsets = [0, 64], sizes = [64, 32], strides = [1, 1]} : vector<64x96xf32> to vector<64x32xf32>
    %33 = arith.truncf %32 : vector<64x32xf32> to vector<64x32xbf16>
    %34 = arith.mulf %31, %31 : vector<64x32xf32>
    %cst_15 = arith.constant dense<0.000000e+00> : vector<32xf32>
    %35 = vector.multi_reduction <add>, %34, %cst_15 [0] : vector<64x32xf32> to vector<32xf32>
    %36 = vector.shape_cast %35 : vector<32xf32> to vector<1x32xf32>
    %cst_16 = arith.constant 1.000000e-24 : f32
    %37 = vector.broadcast %cst_16 : f32 to vector<1x32xf32>
    %38 = arith.maximumf %36, %37 : vector<1x32xf32>
    %39 = math.rsqrt %38 : vector<1x32xf32>
    %40 = arith.mulf %30, %30 : vector<64x32xf32>
    %cst_17 = arith.constant dense<0.000000e+00> : vector<32xf32>
    %41 = vector.multi_reduction <add>, %40, %cst_17 [0] : vector<64x32xf32> to vector<32xf32>
    %42 = vector.shape_cast %41 : vector<32xf32> to vector<1x32xf32>
    %cst_18 = arith.constant 1.000000e-24 : f32
    %43 = vector.broadcast %cst_18 : f32 to vector<1x32xf32>
    %44 = arith.maximumf %42, %43 : vector<1x32xf32>
    %45 = math.rsqrt %44 : vector<1x32xf32>
    %cst_19 = arith.constant 0.353553385 : f32
    %46 = vector.broadcast %cst_19 : f32 to vector<1x32xf32>
    %47 = arith.mulf %46, %45 : vector<1x32xf32>
    %48 = vector.broadcast %39 : vector<1x32xf32> to vector<64x32xf32>
    %49 = arith.mulf %31, %48 : vector<64x32xf32>
    %50 = arith.truncf %49 : vector<64x32xf32> to vector<64x32xbf16>
    %51 = arith.truncf %30 : vector<64x32xf32> to vector<64x32xbf16>
    %cst_20 = arith.constant dense<0.000000e+00> : vector<32x32xf32>
    %52 = tpu.matmul %50, %51, %cst_20 {dimension_numbers = #tpu.dot_dimension_numbers<[0], [0], [1], [1], [0, 1, 1, 1], [], []>} : vector<64x32xbf16>, vector<64x32xbf16>, vector<32x32xf32> -> vector<32x32xf32>
    %53 = vector.broadcast %47 : vector<1x32xf32> to vector<32x32xf32>
    %54 = arith.mulf %52, %53 : vector<32x32xf32>
    %55 = tpu.iota {dimensions = array<i32: 0>} : vector<32x32xi32>
    %56 = arith.sitofp %55 : vector<32x32xi32> to vector<32x32xf32>
    %57 = tpu.iota {dimensions = array<i32: 1>} : vector<32x32xi32>
    %58 = arith.sitofp %57 : vector<32x32xi32> to vector<32x32xf32>
    %cst_21 = arith.constant 5.000000e-01 : f32
    %59 = vector.broadcast %cst_21 : f32 to vector<32x32xf32>
    %60 = arith.addf %56, %59 : vector<32x32xf32>
    %cst_22 = arith.constant 1.250000e-01 : f32
    %61 = vector.broadcast %cst_22 : f32 to vector<32x32xf32>
    %62 = arith.mulf %60, %61 : vector<32x32xf32>
    %63 = math.floor %62 : vector<32x32xf32>
    %cst_23 = arith.constant 5.000000e-01 : f32
    %64 = vector.broadcast %cst_23 : f32 to vector<32x32xf32>
    %65 = arith.addf %58, %64 : vector<32x32xf32>
    %cst_24 = arith.constant 1.250000e-01 : f32
    %66 = vector.broadcast %cst_24 : f32 to vector<32x32xf32>
    %67 = arith.mulf %65, %66 : vector<32x32xf32>
    %68 = math.floor %67 : vector<32x32xf32>
    %69 = arith.cmpf oeq, %63, %68 : vector<32x32xf32>
    %70 = math.exp %54 : vector<32x32xf32>
    %cst_25 = arith.constant 0.000000e+00 : f32
    %71 = vector.broadcast %cst_25 : f32 to vector<32x32xf32>
    %72 = arith.select %69, %70, %71 : vector<32x32xi1>, vector<32x32xf32>
    %cst_26 = arith.constant dense<0.000000e+00> : vector<32xf32>
    %73 = vector.multi_reduction <add>, %72, %cst_26 [1] : vector<32x32xf32> to vector<32xf32>
    %74 = vector.shape_cast %73 : vector<32xf32> to vector<32x1xf32>
    %75 = tpu.reciprocal %74 {approx = true} : vector<32x1xf32> -> vector<32x1xf32>
    %76 = vector.broadcast %75 : vector<32x1xf32> to vector<32x32xf32>
    %77 = arith.mulf %72, %76 : vector<32x32xf32>
    %78 = arith.truncf %77 : vector<32x32xf32> to vector<32x32xbf16>
    %cst_27 = arith.constant dense<0.000000e+00> : vector<32x64xf32>
    %79 = tpu.matmul %78, %33, %cst_27 {dimension_numbers = #tpu.dot_dimension_numbers<[1], [1], [0], [0], [0, 0, 1, 0], [], []>} : vector<32x32xbf16>, vector<64x32xbf16>, vector<32x64xf32> -> vector<32x64xf32>
    %c0_28 = arith.constant 0 : index
    %c0_29 = arith.constant 0 : index
    %80 = vector.load %arg6[%c0_28, %c0_29] : memref<64x64xbf16, #tpu.memory_space<vmem>>, vector<64x64xbf16>
    %81 = vector.extract_strided_slice %80 {offsets = [0, 0], sizes = [64, 32], strides = [1, 1]} : vector<64x64xbf16> to vector<64x32xbf16>
    %82 = vector.extract_strided_slice %79 {offsets = [0, 0], sizes = [32, 32], strides = [1, 1]} : vector<32x64xf32> to vector<32x32xf32>
    %83 = arith.truncf %82 : vector<32x32xf32> to vector<32x32xbf16>
    %cst_30 = arith.constant dense<0.000000e+00> : vector<64x32xf32>
    %84 = tpu.matmul %81, %83, %cst_30 {dimension_numbers = #tpu.dot_dimension_numbers<[1], [0], [0], [1], [0, 0, 1, 1], [], []>} : vector<64x32xbf16>, vector<32x32xbf16>, vector<64x32xf32> -> vector<64x32xf32>
    %85 = vector.extract_strided_slice %80 {offsets = [0, 32], sizes = [64, 32], strides = [1, 1]} : vector<64x64xbf16> to vector<64x32xbf16>
    %86 = vector.extract_strided_slice %79 {offsets = [0, 32], sizes = [32, 32], strides = [1, 1]} : vector<32x64xf32> to vector<32x32xf32>
    %87 = arith.truncf %86 : vector<32x32xf32> to vector<32x32xbf16>
    %cst_31 = arith.constant dense<0.000000e+00> : vector<64x32xf32>
    %88 = tpu.matmul %85, %87, %cst_31 {dimension_numbers = #tpu.dot_dimension_numbers<[1], [0], [0], [1], [0, 0, 1, 1], [], []>} : vector<64x32xbf16>, vector<32x32xbf16>, vector<64x32xf32> -> vector<64x32xf32>
    %89 = arith.addf %84, %88 : vector<64x32xf32>
    %90 = arith.truncf %89 : vector<64x32xf32> to vector<64x32xbf16>
    %c0_32 = arith.constant 0 : index
    %c0_33 = arith.constant 0 : index
    %91 = vector.load %arg7[%c0_32, %c0_33] : memref<32x32xbf16, #tpu.memory_space<vmem>>, vector<32x32xbf16>
    %cst_34 = arith.constant dense<0.000000e+00> : vector<64x32xf32>
    %92 = tpu.matmul %90, %91, %cst_34 {dimension_numbers = #tpu.dot_dimension_numbers<[1], [0], [0], [1], [0, 0, 1, 1], [], []>} : vector<64x32xbf16>, vector<32x32xbf16>, vector<64x32xf32> -> vector<64x32xf32>
    %c0_35 = arith.constant 0 : index
    %c0_36 = arith.constant 0 : index
    %93 = vector.load %arg8[%c0_35, %c0_36] : memref<1x32xf32, #tpu.memory_space<vmem>>, vector<1x32xf32>
    %94 = vector.broadcast %93 : vector<1x32xf32> to vector<64x32xf32>
    %95 = arith.addf %92, %94 : vector<64x32xf32>
    %96 = arith.addf %1, %95 : vector<64x32xf32>
    %c0_37 = arith.constant 0 : index
    %c0_38 = arith.constant 0 : index
    %97 = vector.load %arg9[%c0_37, %c0_38] : memref<1x32xf32, #tpu.memory_space<vmem>>, vector<1x32xf32>
    %c0_39 = arith.constant 0 : index
    %c0_40 = arith.constant 0 : index
    %98 = vector.load %arg10[%c0_39, %c0_40] : memref<1x32xf32, #tpu.memory_space<vmem>>, vector<1x32xf32>
    %cst_41 = arith.constant dense<0.000000e+00> : vector<64xf32>
    %99 = vector.multi_reduction <add>, %96, %cst_41 [1] : vector<64x32xf32> to vector<64xf32>
    %100 = vector.shape_cast %99 : vector<64xf32> to vector<64x1xf32>
    %cst_42 = arith.constant 3.200000e+01 : f32
    %101 = vector.broadcast %cst_42 : f32 to vector<64x1xf32>
    %102 = arith.divf %100, %101 : vector<64x1xf32>
    %103 = vector.broadcast %102 : vector<64x1xf32> to vector<64x32xf32>
    %104 = arith.subf %96, %103 : vector<64x32xf32>
    %105 = arith.mulf %104, %104 : vector<64x32xf32>
    %cst_43 = arith.constant dense<0.000000e+00> : vector<64xf32>
    %106 = vector.multi_reduction <add>, %105, %cst_43 [1] : vector<64x32xf32> to vector<64xf32>
    %107 = vector.shape_cast %106 : vector<64xf32> to vector<64x1xf32>
    %cst_44 = arith.constant 3.200000e+01 : f32
    %108 = vector.broadcast %cst_44 : f32 to vector<64x1xf32>
    %109 = arith.divf %107, %108 : vector<64x1xf32>
    %cst_45 = arith.constant 9.99999974E-6 : f32
    %110 = vector.broadcast %cst_45 : f32 to vector<64x1xf32>
    %111 = arith.addf %109, %110 : vector<64x1xf32>
    %112 = math.rsqrt %111 : vector<64x1xf32>
    %113 = vector.broadcast %112 : vector<64x1xf32> to vector<64x32xf32>
    %114 = arith.mulf %104, %113 : vector<64x32xf32>
    %115 = vector.broadcast %97 : vector<1x32xf32> to vector<64x32xf32>
    %116 = arith.mulf %114, %115 : vector<64x32xf32>
    %117 = vector.broadcast %98 : vector<1x32xf32> to vector<64x32xf32>
    %118 = arith.addf %116, %117 : vector<64x32xf32>
    %119 = arith.truncf %118 : vector<64x32xf32> to vector<64x32xbf16>
    %c0_46 = arith.constant 0 : index
    %c0_47 = arith.constant 0 : index
    %120 = vector.load %arg11[%c0_46, %c0_47] : memref<32x128xbf16, #tpu.memory_space<vmem>>, vector<32x128xbf16>
    %cst_48 = arith.constant dense<0.000000e+00> : vector<64x128xf32>
    %121 = tpu.matmul %119, %120, %cst_48 {dimension_numbers = #tpu.dot_dimension_numbers<[1], [0], [0], [1], [0, 0, 1, 1], [], []>} : vector<64x32xbf16>, vector<32x128xbf16>, vector<64x128xf32> -> vector<64x128xf32>
    %c0_49 = arith.constant 0 : index
    %c0_50 = arith.constant 0 : index
    %122 = vector.load %arg12[%c0_49, %c0_50] : memref<1x128xf32, #tpu.memory_space<vmem>>, vector<1x128xf32>
    %123 = vector.broadcast %122 : vector<1x128xf32> to vector<64x128xf32>
    %124 = arith.addf %121, %123 : vector<64x128xf32>
    %cst_51 = arith.constant 5.000000e-01 : f32
    %125 = vector.broadcast %cst_51 : f32 to vector<64x128xf32>
    %126 = arith.mulf %125, %124 : vector<64x128xf32>
    %cst_52 = arith.constant 0.707106769 : f32
    %127 = vector.broadcast %cst_52 : f32 to vector<64x128xf32>
    %128 = arith.mulf %124, %127 : vector<64x128xf32>
    %cst_53 = arith.constant 0.000000e+00 : f32
    %129 = vector.broadcast %cst_53 : f32 to vector<64x128xf32>
    %130 = arith.cmpf oge, %128, %129 : vector<64x128xf32>
    %cst_54 = arith.constant 1.000000e+00 : f32
    %cst_55 = arith.constant -1.000000e+00 : f32
    %131 = vector.broadcast %cst_54 : f32 to vector<64x128xf32>
    %132 = vector.broadcast %cst_55 : f32 to vector<64x128xf32>
    %133 = arith.select %130, %131, %132 : vector<64x128xi1>, vector<64x128xf32>
    %134 = math.absf %128 : vector<64x128xf32>
    %cst_56 = arith.constant 0.327591091 : f32
    %135 = vector.broadcast %cst_56 : f32 to vector<64x128xf32>
    %136 = arith.mulf %135, %134 : vector<64x128xf32>
    %cst_57 = arith.constant 1.000000e+00 : f32
    %137 = vector.broadcast %cst_57 : f32 to vector<64x128xf32>
    %138 = arith.addf %137, %136 : vector<64x128xf32>
    %cst_58 = arith.constant 1.000000e+00 : f32
    %139 = vector.broadcast %cst_58 : f32 to vector<64x128xf32>
    %140 = arith.divf %139, %138 : vector<64x128xf32>
    %cst_59 = arith.constant 1.06140542 : f32
    %141 = vector.broadcast %cst_59 : f32 to vector<64x128xf32>
    %142 = arith.mulf %141, %140 : vector<64x128xf32>
    %cst_60 = arith.constant -1.45315206 : f32
    %143 = vector.broadcast %cst_60 : f32 to vector<64x128xf32>
    %144 = arith.addf %142, %143 : vector<64x128xf32>
    %145 = arith.mulf %144, %140 : vector<64x128xf32>
    %cst_61 = arith.constant 1.42141378 : f32
    %146 = vector.broadcast %cst_61 : f32 to vector<64x128xf32>
    %147 = arith.addf %145, %146 : vector<64x128xf32>
    %148 = arith.mulf %147, %140 : vector<64x128xf32>
    %cst_62 = arith.constant -0.284496725 : f32
    %149 = vector.broadcast %cst_62 : f32 to vector<64x128xf32>
    %150 = arith.addf %148, %149 : vector<64x128xf32>
    %151 = arith.mulf %150, %140 : vector<64x128xf32>
    %cst_63 = arith.constant 0.254829586 : f32
    %152 = vector.broadcast %cst_63 : f32 to vector<64x128xf32>
    %153 = arith.addf %151, %152 : vector<64x128xf32>
    %154 = arith.mulf %153, %140 : vector<64x128xf32>
    %cst_64 = arith.constant 0.000000e+00 : f32
    %155 = vector.broadcast %cst_64 : f32 to vector<64x128xf32>
    %156 = arith.subf %155, %134 : vector<64x128xf32>
    %157 = arith.mulf %156, %134 : vector<64x128xf32>
    %158 = math.exp %157 : vector<64x128xf32>
    %159 = arith.mulf %154, %158 : vector<64x128xf32>
    %cst_65 = arith.constant 1.000000e+00 : f32
    %160 = vector.broadcast %cst_65 : f32 to vector<64x128xf32>
    %161 = arith.subf %160, %159 : vector<64x128xf32>
    %162 = arith.mulf %133, %161 : vector<64x128xf32>
    %cst_66 = arith.constant 1.000000e+00 : f32
    %163 = vector.broadcast %cst_66 : f32 to vector<64x128xf32>
    %164 = arith.addf %163, %162 : vector<64x128xf32>
    %165 = arith.mulf %126, %164 : vector<64x128xf32>
    %166 = arith.truncf %165 : vector<64x128xf32> to vector<64x128xbf16>
    %c0_67 = arith.constant 0 : index
    %c0_68 = arith.constant 0 : index
    %167 = vector.load %arg13[%c0_67, %c0_68] : memref<128x32xbf16, #tpu.memory_space<vmem>>, vector<128x32xbf16>
    %cst_69 = arith.constant dense<0.000000e+00> : vector<64x32xf32>
    %168 = tpu.matmul %166, %167, %cst_69 {dimension_numbers = #tpu.dot_dimension_numbers<[1], [0], [0], [1], [0, 0, 1, 1], [], []>} : vector<64x128xbf16>, vector<128x32xbf16>, vector<64x32xf32> -> vector<64x32xf32>
    %c0_70 = arith.constant 0 : index
    %c0_71 = arith.constant 0 : index
    %169 = vector.load %arg14[%c0_70, %c0_71] : memref<1x32xf32, #tpu.memory_space<vmem>>, vector<1x32xf32>
    %170 = vector.broadcast %169 : vector<1x32xf32> to vector<64x32xf32>
    %171 = arith.addf %168, %170 : vector<64x32xf32>
    %172 = arith.addf %96, %171 : vector<64x32xf32>
    %c0_72 = arith.constant 0 : index
    %c0_73 = arith.constant 0 : index
    %c0_74 = arith.constant 0 : index
    %173 = vector.load %arg15[%c0_72, %c0_73, %c0_74] : memref<1x64x32xf32, #tpu.memory_space<vmem>>, vector<1x64x32xf32>
    %174 = vector.shape_cast %173 : vector<1x64x32xf32> to vector<64x32xf32>
    %175 = vector.shape_cast %172 : vector<64x32xf32> to vector<1x64x32xf32>
    tpu.vector_store %arg15[%c0_72, %c0_73, %c0_74], %175 {strides = array<i32>} : memref<1x64x32xf32, #tpu.memory_space<vmem>>, vector<1x64x32xf32>,
    return
  }
  func.func @transform_0(%arg0: i32) -> (i32, i32, i32) {
    %c0_i32 = arith.constant 0 : i32
    %c0_i32_0 = arith.constant 0 : i32
    %c0_i32_1 = arith.constant 0 : i32
    return %arg0, %c0_i32, %c0_i32_0 : i32, i32, i32
  }
  func.func @transform_1(%arg0: i32) -> (i32, i32) {
    %c0_i32 = arith.constant 0 : i32
    %c0_i32_0 = arith.constant 0 : i32
    %c0_i32_1 = arith.constant 0 : i32
    return %c0_i32, %c0_i32_0 : i32, i32
  }
  func.func @transform_2(%arg0: i32) -> (i32, i32) {
    %c0_i32 = arith.constant 0 : i32
    %c0_i32_0 = arith.constant 0 : i32
    %c0_i32_1 = arith.constant 0 : i32
    return %c0_i32, %c0_i32_0 : i32, i32
  }
  func.func @transform_3(%arg0: i32) -> (i32, i32) {
    %c0_i32 = arith.constant 0 : i32
    %c0_i32_0 = arith.constant 0 : i32
    %c0_i32_1 = arith.constant 0 : i32
    return %c0_i32, %c0_i32_0 : i32, i32
  }
  func.func @transform_4(%arg0: i32) -> (i32, i32) {
    %c0_i32 = arith.constant 0 : i32
    %c0_i32_0 = arith.constant 0 : i32
    %c0_i32_1 = arith.constant 0 : i32
    return %c0_i32, %c0_i32_0 : i32, i32
  }
  func.func @transform_5(%arg0: i32) -> (i32, i32) {
    %c0_i32 = arith.constant 0 : i32
    %c0_i32_0 = arith.constant 0 : i32
    %c0_i32_1 = arith.constant 0 : i32
    return %c0_i32, %c0_i32_0 : i32, i32
  }
  func.func @transform_6(%arg0: i32) -> (i32, i32) {
    %c0_i32 = arith.constant 0 : i32
    %c0_i32_0 = arith.constant 0 : i32
    %c0_i32_1 = arith.constant 0 : i32
    return %c0_i32, %c0_i32_0 : i32, i32
  }
  func.func @transform_7(%arg0: i32) -> (i32, i32) {
    %c0_i32 = arith.constant 0 : i32
    %c0_i32_0 = arith.constant 0 : i32
    %c0_i32_1 = arith.constant 0 : i32
    return %c0_i32, %c0_i32_0 : i32, i32
  }
  func.func @transform_8(%arg0: i32) -> (i32, i32) {
    %c0_i32 = arith.constant 0 : i32
    %c0_i32_0 = arith.constant 0 : i32
    %c0_i32_1 = arith.constant 0 : i32
    return %c0_i32, %c0_i32_0 : i32, i32
  }
  func.func @transform_9(%arg0: i32) -> (i32, i32) {
    %c0_i32 = arith.constant 0 : i32
    %c0_i32_0 = arith.constant 0 : i32
    %c0_i32_1 = arith.constant 0 : i32
    return %c0_i32, %c0_i32_0 : i32, i32
  }
  func.func @transform_10(%arg0: i32) -> (i32, i32) {
    %c0_i32 = arith.constant 0 : i32
    %c0_i32_0 = arith.constant 0 : i32
    %c0_i32_1 = arith.constant 0 : i32
    return %c0_i32, %c0_i32_0 : i32, i32
  }
  func.func @transform_11(%arg0: i32) -> (i32, i32) {
    %c0_i32 = arith.constant 0 : i32
    %c0_i32_0 = arith.constant 0 : i32
    %c0_i32_1 = arith.constant 0 : i32
    return %c0_i32, %c0_i32_0 : i32, i32
  }
  func.func @transform_12(%arg0: i32) -> (i32, i32) {
    %c0_i32 = arith.constant 0 : i32
    %c0_i32_0 = arith.constant 0 : i32
    %c0_i32_1 = arith.constant 0 : i32
    return %c0_i32, %c0_i32_0 : i32, i32
  }
  func.func @transform_13(%arg0: i32) -> (i32, i32) {
    %c0_i32 = arith.constant 0 : i32
    %c0_i32_0 = arith.constant 0 : i32
    %c0_i32_1 = arith.constant 0 : i32
    return %c0_i32, %c0_i32_0 : i32, i32
  }
  func.func @transform_14(%arg0: i32) -> (i32, i32, i32) {
    %c0_i32 = arith.constant 0 : i32
    %c0_i32_0 = arith.constant 0 : i32
    %c0_i32_1 = arith.constant 0 : i32
    return %arg0, %c0_i32, %c0_i32_0 : i32, i32, i32
  }
}

</mosaic_0001>

<llo_original>
// kernel: channel_transformer_layer.2
$region0: #{channel_transformer_layer.2}
  #allocation0 [shape = 'u32[]', space=smem, size = 0x4, offset = 0x4, fixed_abs, tag = 'smem constant byte address 0x4 - core index']
  #allocation1 [shape = 'u32[144,128]{1,0:T(1,128)}', space=vmem, size = 0x12000, scoped, tag = 'internal scratch']
  %s0 = inlined_call_operand.vmem [shape: f32[2,64,32], index: 0, kind: input, shape index: {}]
  %s1 = inlined_call_operand.vmem [shape: f32[1,32], index: 1, kind: input, shape index: {}]
  %s2 = inlined_call_operand.vmem [shape: f32[1,32], index: 2, kind: input, shape index: {}]
  %s3 = inlined_call_operand.vmem [shape: bf16[32,96], index: 3, kind: input, shape index: {}]
  %s4 = inlined_call_operand.vmem [shape: f32[1,96], index: 4, kind: input, shape index: {}]
  %s5 = inlined_call_operand.vmem [shape: bf16[64,64], index: 5, kind: input, shape index: {}]
  %s6 = inlined_call_operand.vmem [shape: bf16[32,32], index: 6, kind: input, shape index: {}]
  %s7 = inlined_call_operand.vmem [shape: f32[1,32], index: 7, kind: input, shape index: {}]
  %s8 = inlined_call_operand.vmem [shape: f32[1,32], index: 8, kind: input, shape index: {}]
  %s9 = inlined_call_operand.vmem [shape: f32[1,32], index: 9, kind: input, shape index: {}]
  %s10 = inlined_call_operand.vmem [shape: bf16[32,128], index: 10, kind: input, shape index: {}]
  %s11 = inlined_call_operand.vmem [shape: f32[1,128], index: 11, kind: input, shape index: {}]
  %s12 = inlined_call_operand.vmem [shape: bf16[128,32], index: 12, kind: input, shape index: {}]
  %s13 = inlined_call_operand.vmem [shape: f32[1,32], index: 13, kind: input, shape index: {}]
  %s14 = inlined_call_operand.vmem [shape: f32[2,64,32], index: 14, kind: output, shape index: {}]
  %s15 = sld [smem:[#allocation0]]
  $region89: #{channel_transformer_layer.2} parent=0
    _
  %s17 = ssub.s32 1, %s15
  %s18 = scalar_select 0, %s17, %s15
  loop: start=0, step=1, limit=4
  $region2: #{channel_transformer_layer.2} parent=0 // loop_pre_header
    _
  $region3: #{channel_transformer_layer.2} parent=0 // loop_header
    %s20 = sphi 0, %s24
    %p21 = scmp.ge.s32.totalorder %s20, 4
    %s30 = sphi 0, %s32
    %s33 = sphi 0, %s30
    %s34 = sphi 0, %s33
    %s50 = sphi 0, %s34
    %s54 = sphi 0, %s54
    %s56 = sphi 0, %s54
    %s57 = sphi 0, %s56
    %s71 = sphi 0, %s57
    %s75 = sphi 0, %s75
    %s77 = sphi 0, %s75
    %s78 = sphi 0, %s77
    %s92 = sphi 0, %s78
    %s96 = sphi 0, %s96
    %s98 = sphi 0, %s96
    %s99 = sphi 0, %s98
    %s113 = sphi 0, %s99
    %s117 = sphi 0, %s117
    %s119 = sphi 0, %s117
    %s120 = sphi 0, %s119
    %s134 = sphi 0, %s120
    %s138 = sphi 0, %s138
    %s140 = sphi 0, %s138
    %s141 = sphi 0, %s140
    %s155 = sphi 0, %s141
    %s159 = sphi 0, %s159
    %s161 = sphi 0, %s159
    %s162 = sphi 0, %s161
    %s176 = sphi 0, %s162
    %s180 = sphi 0, %s180
    %s182 = sphi 0, %s180
    %s183 = sphi 0, %s182
    %s197 = sphi 0, %s183
    %s201 = sphi 0, %s201
    %s203 = sphi 0, %s201
    %s204 = sphi 0, %s203
    %s218 = sphi 0, %s204
    %s222 = sphi 0, %s222
    %s224 = sphi 0, %s222
    %s225 = sphi 0, %s224
    %s239 = sphi 0, %s225
    %s243 = sphi 0, %s243
    %s245 = sphi 0, %s243
    %s246 = sphi 0, %s245
    %s260 = sphi 0, %s246
    %s264 = sphi 0, %s264
    %s266 = sphi 0, %s264
    %s267 = sphi 0, %s266
    %s281 = sphi 0, %s267
    %s285 = sphi 0, %s285
    %s287 = sphi 0, %s285
    %s288 = sphi 0, %s287
    %s302 = sphi 0, %s288
    %s306 = sphi 0, %s306
    %s308 = sphi 0, %s306
    %s309 = sphi 0, %s308
    %s323 = sphi 0, %s309
    %s329 = sphi 0, %s331
    %s332 = sphi 0, %s329
    %s333 = sphi 0, %s332
    %s349 = sphi 0, %s333
  $region4: #{channel_transformer_layer.2} parent=0 // loop_header_branch
    %23 = sbr.rel (%p21) target = $region8
  $region5: #{channel_transformer_layer.2} parent=0 // loop_body
    %s25 = ssub.s32 %s20, 1
    %s26 = ssub.s32 %s20, 2
    %s27 = sadd.s32 %s20, 1
    %s28 = ssub.s32 %s20, %s27
    %p29 = scmp.eq.s32.totalorder %s28, 0
    %s31 = sadd.s32 %s30, 1
    %s32 = scalar_select %p29, %s30, %s31
    %p35 = pneg %p29
    %p36 = scmp.eq.s32.totalorder %s20, 1
    %p37 = por %p35, %p36
    %p38 = scmp.ne.s32.totalorder %s30, %s33
    %p39 = scmp.eq.s32.totalorder %s20, 0
    %p40 = por %p38, %p39
    %p41 = scmp.ne.s32.totalorder %s30, %s33
    %p42 = scmp.eq.s32.totalorder %s25, 1
    %p43 = por %p41, %p42
    %p44 = scmp.ne.s32.totalorder %s33, %s34
    %p45 = scmp.eq.s32.totalorder %s25, 0
    %p46 = por %p44, %p45
    %p47 = scmp.ne.s32.totalorder %s33, %s34
    %p48 = scmp.eq.s32.totalorder %s26, 1
    %p49 = por %p47, %p48
    %p51 = scmp.ne.s32.totalorder %s34, %s50
    %p52 = scmp.eq.s32.totalorder %s26, 0
    %p53 = por %p51, %p52
    %s55 = sadd.s32 %s54, 1
    %p58 = scmp.eq.s32.totalorder %s20, 1
    %p59 = scmp.ne.s32.totalorder %s54, %s56
    %p60 = scmp.eq.s32.totalorder %s20, 0
    %p61 = por %p59, %p60
    %p62 = scmp.ne.s32.totalorder %s54, %s56
    %p63 = scmp.eq.s32.totalorder %s25, 1
    %p64 = por %p62, %p63
    %p65 = scmp.ne.s32.totalorder %s56, %s57
    %p66 = scmp.eq.s32.totalorder %s25, 0
    %p67 = por %p65, %p66
    %p68 = scmp.ne.s32.totalorder %s56, %s57
    %p69 = scmp.eq.s32.totalorder %s26, 1
    %p70 = por %p68, %p69
    %p72 = scmp.ne.s32.totalorder %s57, %s71
    %p73 = scmp.eq.s32.totalorder %s26, 0
    %p74 = por %p72, %p73
    %s76 = sadd.s32 %s75, 1
    %p79 = scmp.eq.s32.totalorder %s20, 1
    %p80 = scmp.ne.s32.totalorder %s75, %s77
    %p81 = scmp.eq.s32.totalorder %s20, 0
    %p82 = por %p80, %p81
    %p83 = scmp.ne.s32.totalorder %s75, %s77
    %p84 = scmp.eq.s32.totalorder %s25, 1
    %p85 = por %p83, %p84
    %p86 = scmp.ne.s32.totalorder %s77, %s78
    %p87 = scmp.eq.s32.totalorder %s25, 0
    %p88 = por %p86, %p87
    %p89 = scmp.ne.s32.totalorder %s77, %s78
    %p90 = scmp.eq.s32.totalorder %s26, 1
    %p91 = por %p89, %p90
    %p93 = scmp.ne.s32.totalorder %s78, %s92
    %p94 = scmp.eq.s32.totalorder %s26, 0
    %p95 = por %p93, %p94
    %s97 = sadd.s32 %s96, 1
    %p100 = scmp.eq.s32.totalorder %s20, 1
    %p101 = scmp.ne.s32.totalorder %s96, %s98
    %p102 = scmp.eq.s32.totalorder %s20, 0
    %p103 = por %p101, %p102
    %p104 = scmp.ne.s32.totalorder %s96, %s98
    %p105 = scmp.eq.s32.totalorder %s25, 1
    %p106 = por %p104, %p105
    %p107 = scmp.ne.s32.totalorder %s98, %s99
    %p108 = scmp.eq.s32.totalorder %s25, 0
    %p109 = por %p107, %p108
    %p110 = scmp.ne.s32.totalorder %s98, %s99
    %p111 = scmp.eq.s32.totalorder %s26, 1
    %p112 = por %p110, %p111
    %p114 = scmp.ne.s32.totalorder %s99, %s113
    %p115 = scmp.eq.s32.totalorder %s26, 0
    %p116 = por %p114, %p115
    %s118 = sadd.s32 %s117, 1
    %p121 = scmp.eq.s32.totalorder %s20, 1
    %p122 = scmp.ne.s32.totalorder %s117, %s119
    %p123 = scmp.eq.s32.totalorder %s20, 0
    %p124 = por %p122, %p123
    %p125 = scmp.ne.s32.totalorder %s117, %s119
    %p126 = scmp.eq.s32.totalorder %s25, 1
    %p127 = por %p125, %p126
    %p128 = scmp.ne.s32.totalorder %s119, %s120
    %p129 = scmp.eq.s32.totalorder %s25, 0
    %p130 = por %p128, %p129
    %p131 = scmp.ne.s32.totalorder %s119, %s120
    %p132 = scmp.eq.s32.totalorder %s26, 1
    %p133 = por %p131, %p132
    %p135 = scmp.ne.s32.totalorder %s120, %s134
    %p136 = scmp.eq.s32.totalorder %s26, 0
    %p137 = por %p135, %p136
    %s139 = sadd.s32 %s138, 1
    %p142 = scmp.eq.s32.totalorder %s20, 1
    %p143 = scmp.ne.s32.totalorder %s138, %s140
    %p144 = scmp.eq.s32.totalorder %s20, 0
    %p145 = por %p143, %p144
    %p146 = scmp.ne.s32.totalorder %s138, %s140
    %p147 = scmp.eq.s32.totalorder %s25, 1
    %p148 = por %p146, %p147
    %p149 = scmp.ne.s32.totalorder %s140, %s141
    %p150 = scmp.eq.s32.totalorder %s25, 0
    %p151 = por %p149, %p150
    %p152 = scmp.ne.s32.totalorder %s140, %s141
    %p153 = scmp.eq.s32.totalorder %s26, 1
    %p154 = por %p152, %p153
    %p156 = scmp.ne.s32.totalorder %s141, %s155
    %p157 = scmp.eq.s32.totalorder %s26, 0
    %p158 = por %p156, %p157
    %s160 = sadd.s32 %s159, 1
    %p163 = scmp.eq.s32.totalorder %s20, 1
    %p164 = scmp.ne.s32.totalorder %s159, %s161
    %p165 = scmp.eq.s32.totalorder %s20, 0
    %p166 = por %p164, %p165
    %p167 = scmp.ne.s32.totalorder %s159, %s161
    %p168 = scmp.eq.s32.totalorder %s25, 1
    %p169 = por %p167, %p168
    %p170 = scmp.ne.s32.totalorder %s161, %s162
    %p171 = scmp.eq.s32.totalorder %s25, 0
    %p172 = por %p170, %p171
    %p173 = scmp.ne.s32.totalorder %s161, %s162
    %p174 = scmp.eq.s32.totalorder %s26, 1
    %p175 = por %p173, %p174
    %p177 = scmp.ne.s32.totalorder %s162, %s176
    %p178 = scmp.eq.s32.totalorder %s26, 0
    %p179 = por %p177, %p178
    %s181 = sadd.s32 %s180, 1
    %p184 = scmp.eq.s32.totalorder %s20, 1
    %p185 = scmp.ne.s32.totalorder %s180, %s182
    %p186 = scmp.eq.s32.totalorder %s20, 0
    %p187 = por %p185, %p186
    %p188 = scmp.ne.s32.totalorder %s180, %s182
    %p189 = scmp.eq.s32.totalorder %s25, 1
    %p190 = por %p188, %p189
    %p191 = scmp.ne.s32.totalorder %s182, %s183
    %p192 = scmp.eq.s32.totalorder %s25, 0
    %p193 = por %p191, %p192
    %p194 = scmp.ne.s32.totalorder %s182, %s183
    %p195 = scmp.eq.s32.totalorder %s26, 1
    %p196 = por %p194, %p195
    %p198 = scmp.ne.s32.totalorder %s183, %s197
    %p199 = scmp.eq.s32.totalorder %s26, 0
    %p200 = por %p198, %p199
    %s202 = sadd.s32 %s201, 1
    %p205 = scmp.eq.s32.totalorder %s20, 1
    %p206 = scmp.ne.s32.totalorder %s201, %s203
    %p207 = scmp.eq.s32.totalorder %s20, 0
    %p208 = por %p206, %p207
    %p209 = scmp.ne.s32.totalorder %s201, %s203
    %p210 = scmp.eq.s32.totalorder %s25, 1
    %p211 = por %p209, %p210
    %p212 = scmp.ne.s32.totalorder %s203, %s204
    %p213 = scmp.eq.s32.totalorder %s25, 0
    %p214 = por %p212, %p213
    %p215 = scmp.ne.s32.totalorder %s203, %s204
    %p216 = scmp.eq.s32.totalorder %s26, 1
    %p217 = por %p215, %p216
    %p219 = scmp.ne.s32.totalorder %s204, %s218
    %p220 = scmp.eq.s32.totalorder %s26, 0
    %p221 = por %p219, %p220
    %s223 = sadd.s32 %s222, 1
    %p226 = scmp.eq.s32.totalorder %s20, 1
    %p227 = scmp.ne.s32.totalorder %s222, %s224
    %p228 = scmp.eq.s32.totalorder %s20, 0
    %p229 = por %p227, %p228
    %p230 = scmp.ne.s32.totalorder %s222, %s224
    %p231 = scmp.eq.s32.totalorder %s25, 1
    %p232 = por %p230, %p231
    %p233 = scmp.ne.s32.totalorder %s224, %s225
    %p234 = scmp.eq.s32.totalorder %s25, 0
    %p235 = por %p233, %p234
    %p236 = scmp.ne.s32.totalorder %s224, %s225
    %p237 = scmp.eq.s32.totalorder %s26, 1
    %p238 = por %p236, %p237
    %p240 = scmp.ne.s32.totalorder %s225, %s239
    %p241 = scmp.eq.s32.totalorder %s26, 0
    %p242 = por %p240, %p241
    %s244 = sadd.s32 %s243, 1
    %p247 = scmp.eq.s32.totalorder %s20, 1
    %p248 = scmp.ne.s32.totalorder %s243, %s245
    %p249 = scmp.eq.s32.totalorder %s20, 0
    %p250 = por %p248, %p249
    %p251 = scmp.ne.s32.totalorder %s243, %s245
    %p252 = scmp.eq.s32.totalorder %s25, 1
    %p253 = por %p251, %p252
    %p254 = scmp.ne.s32.totalorder %s245, %s246
    %p255 = scmp.eq.s32.totalorder %s25, 0
    %p256 = por %p254, %p255
    %p257 = scmp.ne.s32.totalorder %s245, %s246
    %p258 = scmp.eq.s32.totalorder %s26, 1
    %p259 = por %p257, %p258
    %p261 = scmp.ne.s32.totalorder %s246, %s260
    %p262 = scmp.eq.s32.totalorder %s26, 0
    %p263 = por %p261, %p262
    %s265 = sadd.s32 %s264, 1
    %p268 = scmp.eq.s32.totalorder %s20, 1
    %p269 = scmp.ne.s32.totalorder %s264, %s266
    %p270 = scmp.eq.s32.totalorder %s20, 0
    %p271 = por %p269, %p270
    %p272 = scmp.ne.s32.totalorder %s264, %s266
    %p273 = scmp.eq.s32.totalorder %s25, 1
    %p274 = por %p272, %p273
    %p275 = scmp.ne.s32.totalorder %s266, %s267
    %p276 = scmp.eq.s32.totalorder %s25, 0
    %p277 = por %p275, %p276
    %p278 = scmp.ne.s32.totalorder %s266, %s267
    %p279 = scmp.eq.s32.totalorder %s26, 1
    %p280 = por %p278, %p279
    %p282 = scmp.ne.s32.totalorder %s267, %s281
    %p283 = scmp.eq.s32.totalorder %s26, 0
    %p284 = por %p282, %p283
    %s286 = sadd.s32 %s285, 1
    %p289 = scmp.eq.s32.totalorder %s20, 1
    %p290 = scmp.ne.s32.totalorder %s285, %s287
    %p291 = scmp.eq.s32.totalorder %s20, 0
    %p292 = por %p290, %p291
    %p293 = scmp.ne.s32.totalorder %s285, %s287
    %p294 = scmp.eq.s32.totalorder %s25, 1
    %p295 = por %p293, %p294
    %p296 = scmp.ne.s32.totalorder %s287, %s288
    %p297 = scmp.eq.s32.totalorder %s25, 0
    %p298 = por %p296, %p297
    %p299 = scmp.ne.s32.totalorder %s287, %s288
    %p300 = scmp.eq.s32.totalorder %s26, 1
    %p301 = por %p299, %p300
    %p303 = scmp.ne.s32.totalorder %s288, %s302
    %p304 = scmp.eq.s32.totalorder %s26, 0
    %p305 = por %p303, %p304
    %s307 = sadd.s32 %s306, 1
    %p310 = scmp.eq.s32.totalorder %s20, 1
    %p311 = scmp.ne.s32.totalorder %s306, %s308
    %p312 = scmp.eq.s32.totalorder %s20, 0
    %p313 = por %p311, %p312
    %p314 = scmp.ne.s32.totalorder %s306, %s308
    %p315 = scmp.eq.s32.totalorder %s25, 1
    %p316 = por %p314, %p315
    %p317 = scmp.ne.s32.totalorder %s308, %s309
    %p318 = scmp.eq.s32.totalorder %s25, 0
    %p319 = por %p317, %p318
    %p320 = scmp.ne.s32.totalorder %s308, %s309
    %p321 = scmp.eq.s32.totalorder %s26, 1
    %p322 = por %p320, %p321
    %p324 = scmp.ne.s32.totalorder %s309, %s323
    %p325 = scmp.eq.s32.totalorder %s26, 0
    %p326 = por %p324, %p325
    %s327 = ssub.s32 %s20, %s27
    %p328 = scmp.eq.s32.totalorder %s327, 0
    %s330 = sadd.s32 %s329, 1
    %s331 = scalar_select %p328, %s329, %s330
    %p334 = pneg %p328
    %p335 = scmp.eq.s32.totalorder %s20, 1
    %p336 = por %p334, %p335
    %p337 = scmp.ne.s32.totalorder %s329, %s332
    %p338 = scmp.eq.s32.totalorder %s20, 0
    %p339 = por %p337, %p338
    %p340 = scmp.ne.s32.totalorder %s329, %s332
    %p341 = scmp.eq.s32.totalorder %s25, 1
    %p342 = por %p340, %p341
    %p343 = scmp.ne.s32.totalorder %s332, %s333
    %p344 = scmp.eq.s32.totalorder %s25, 0
    %p345 = por %p343, %p344
    %p346 = scmp.ne.s32.totalorder %s332, %s333
    %p347 = scmp.eq.s32.totalorder %s26, 1
    %p348 = por %p346, %p347
    %p350 = scmp.ne.s32.totalorder %s333, %s349
    %p351 = scmp.eq.s32.totalorder %s26, 0
    %p352 = por %p350, %p351
    %p353 = scmp.le.s32.totalorder 1, %s20
    %p354 = scmp.lt.s32.totalorder %s20, 3
    %p355 = pnand %p353, %p354
    %p356 = pneg %p355
    // Predicated region
    $region9: #{channel_transformer_layer.2} parent=5 // pred_check
      _
    $region10: #{channel_transformer_layer.2} parent=5 // pred_check_branch
      %358 = sbr.rel (%p355) target = $region12
    $region11: #{channel_transformer_layer.2} parent=5 // pred_region
      %s359 = ssub.s32 %s20, 1
      // Predicated region
      $region13: #{channel_transformer_layer.2} parent=11 // pred_check
        %p360 = pneg %p67
      $region14: #{channel_transformer_layer.2} parent=11 // pred_check_branch
        %362 = sbr.rel (%p360) target = $region16
      $region15: #{channel_transformer_layer.2} parent=11 // pred_region
        _
      $region16: #{channel_transformer_layer.2} parent=11 // pred_fallthru
        _
      // Predicated region
      $region17: #{channel_transformer_layer.2} parent=11 // pred_check
        %p363 = pneg %p88
      $region18: #{channel_transformer_layer.2} parent=11 // pred_check_branch
        %365 = sbr.rel (%p363) target = $region20
      $region19: #{channel_transformer_layer.2} parent=11 // pred_region
        _
      $region20: #{channel_transformer_layer.2} parent=11 // pred_fallthru
        _
      // Predicated region
      $region21: #{channel_transformer_layer.2} parent=11 // pred_check
        %p366 = pneg %p109
      $region22: #{channel_transformer_layer.2} parent=11 // pred_check_branch
        %368 = sbr.rel (%p366) target = $region24
      $region23: #{channel_transformer_layer.2} parent=11 // pred_region
        _
      $region24: #{channel_transformer_layer.2} parent=11 // pred_fallthru
        _
      // Predicated region
      $region25: #{channel_transformer_layer.2} parent=11 // pred_check
        %p369 = pneg %p130
      $region26: #{channel_transformer_layer.2} parent=11 // pred_check_branch
        %371 = sbr.rel (%p369) target = $region28
      $region27: #{channel_transformer_layer.2} parent=11 // pred_region
        _
      $region28: #{channel_transformer_layer.2} parent=11 // pred_fallthru
        _
      // Predicated region
      $region29: #{channel_transformer_layer.2} parent=11 // pred_check
        %p372 = pneg %p151
      $region30: #{channel_transformer_layer.2} parent=11 // pred_check_branch
        %374 = sbr.rel (%p372) target = $region32
      $region31: #{channel_transformer_layer.2} parent=11 // pred_region
        _
      $region32: #{channel_transformer_layer.2} parent=11 // pred_fallthru
        _
      // Predicated region
      $region33: #{channel_transformer_layer.2} parent=11 // pred_check
        %p375 = pneg %p172
      $region34: #{channel_transformer_layer.2} parent=11 // pred_check_branch
        %377 = sbr.rel (%p375) target = $region36
      $region35: #{channel_transformer_layer.2} parent=11 // pred_region
        _
      $region36: #{channel_transformer_layer.2} parent=11 // pred_fallthru
        _
      // Predicated region
      $region37: #{channel_transformer_layer.2} parent=11 // pred_check
        %p378 = pneg %p193
      $region38: #{channel_transformer_layer.2} parent=11 // pred_check_branch
        %380 = sbr.rel (%p378) target = $region40
      $region39: #{channel_transformer_layer.2} parent=11 // pred_region
        _
      $region40: #{channel_transformer_layer.2} parent=11 // pred_fallthru
        _
      // Predicated region
      $region41: #{channel_transformer_layer.2} parent=11 // pred_check
        %p381 = pneg %p214
      $region42: #{channel_transformer_layer.2} parent=11 // pred_check_branch
        %383 = sbr.rel (%p381) target = $region44
      $region43: #{channel_transformer_layer.2} parent=11 // pred_region
        _
      $region44: #{channel_transformer_layer.2} parent=11 // pred_fallthru
        _
      // Predicated region
      $region45: #{channel_transformer_layer.2} parent=11 // pred_check
        %p384 = pneg %p235
      $region46: #{channel_transformer_layer.2} parent=11 // pred_check_branch
        %386 = sbr.rel (%p384) target = $region48
      $region47: #{channel_transformer_layer.2} parent=11 // pred_region
        _
      $region48: #{channel_transformer_layer.2} parent=11 // pred_fallthru
        _
      // Predicated region
      $region49: #{channel_transformer_layer.2} parent=11 // pred_check
        %p387 = pneg %p256
      $region50: #{channel_transformer_layer.2} parent=11 // pred_check_branch
        %389 = sbr.rel (%p387) target = $region52
      $region51: #{channel_transformer_layer.2} parent=11 // pred_region
        _
      $region52: #{channel_transformer_layer.2} parent=11 // pred_fallthru
        _
      // Predicated region
      $region53: #{channel_transformer_layer.2} parent=11 // pred_check
        %p390 = pneg %p277
      $region54: #{channel_transformer_layer.2} parent=11 // pred_check_branch
        %392 = sbr.rel (%p390) target = $region56
      $region55: #{channel_transformer_layer.2} parent=11 // pred_region
        _
      $region56: #{channel_transformer_layer.2} parent=11 // pred_fallthru
        _
      // Predicated region
      $region57: #{channel_transformer_layer.2} parent=11 // pred_check
        %p393 = pneg %p298
      $region58: #{channel_transformer_layer.2} parent=11 // pred_check_branch
        %395 = sbr.rel (%p393) target = $region60
      $region59: #{channel_transformer_layer.2} parent=11 // pred_region
        _
      $region60: #{channel_transformer_layer.2} parent=11 // pred_fallthru
        _
      // Predicated region
      $region61: #{channel_transformer_layer.2} parent=11 // pred_check
        %p396 = pneg %p319
      $region62: #{channel_transformer_layer.2} parent=11 // pred_check_branch
        %398 = sbr.rel (%p396) target = $region64
      $region63: #{channel_transformer_layer.2} parent=11 // pred_region
        _
      $region64: #{channel_transformer_layer.2} parent=11 // pred_fallthru
        _
    $region12: #{channel_transformer_layer.2} parent=5 // pred_fallthru
      _
    %p399 = scmp.lt.s32.totalorder %s20, 2
    // Predicated region
    $region65: #{channel_transformer_layer.2} parent=5 // pred_check
      %p400 = pneg %p399
    $region66: #{channel_transformer_layer.2} parent=5 // pred_check_branch
      %402 = sbr.rel (%p400) target = $region68
    $region67: #{channel_transformer_layer.2} parent=5 // pred_region
      // Predicated region
      $region69: #{channel_transformer_layer.2} parent=67 // pred_check
        %p403 = pneg %p40
      $region70: #{channel_transformer_layer.2} parent=67 // pred_check_branch
        %405 = sbr.rel (%p403) target = $region72
      $region71: #{channel_transformer_layer.2} parent=67 // pred_region
        %p406 = scmp.lt.s32.totalorder %s20, 1
        %s407 = scalar_select %p406, %s20, 1
        %s408 = smul.addr %s407, 8
        %s409 = smul.addr %s408, 8
        %s410 = scalar_lea.vmem %s0, %s409
      $region72: #{channel_transformer_layer.2} parent=67 // pred_fallthru
        _
    $region68: #{channel_transformer_layer.2} parent=5 // pred_fallthru
      _
    %p411 = scmp.le.s32.totalorder 1, %s20
    %p412 = scmp.lt.s32.totalorder %s20, 3
    %p413 = pnand %p411, %p412
    %p414 = pneg %p413
    // Predicated region
    $region73: #{channel_transformer_layer.2} parent=5 // pred_check
      _
    $region74: #{channel_transformer_layer.2} parent=5 // pred_check_branch
      %416 = sbr.rel (%p413) target = $region76
    $region75: #{channel_transformer_layer.2} parent=5 // pred_region
      %s417 = ssub.s32 %s20, 1
      %p418 = scmp.lt.s32.totalorder %s25, 1
      %s419 = scalar_select %p418, %s25, 1
      %s420 = smul.addr %s419, 8
      %s421 = smul.addr %s420, 8
      %s422 = scalar_lea.vmem %s0, %s421
      %p423 = pneg %p46
      %p424 = pneg %p43
      %p425 = pneg %p67
      %p426 = pneg %p64
      %p427 = pneg %p88
      %p428 = pneg %p85
      %p429 = pneg %p109
      %p430 = pneg %p106
      %p431 = pneg %p130
      %p432 = pneg %p127
      %p433 = pneg %p151
      %p434 = pneg %p148
      %p435 = pneg %p172
      %p436 = pneg %p169
      %p437 = pneg %p193
      %p438 = pneg %p190
      %p439 = pneg %p214
      %p440 = pneg %p211
      %p441 = pneg %p235
      %p442 = pneg %p232
      %p443 = pneg %p256
      %p444 = pneg %p253
      %p445 = pneg %p277
      %p446 = pneg %p274
      %p447 = pneg %p298
      %p448 = pneg %p295
      %p449 = pneg %p319
      %p450 = pneg %p316
      %p451 = pneg %p345
      %p452 = pneg %p342
      %p453 = scmp.lt.s32.totalorder %s25, 1
      %s454 = scalar_select %p453, %s25, 1
      %s455 = smul.addr %s454, 8
      %s456 = smul.addr %s455, 8
      %s457 = scalar_lea.vmem %s14, %s456
      %p458 = scmp.lt.s32.totalorder %s25, 1
      %s459 = scalar_select %p458, %s25, 1
      %s460 = smul.addr %s459, 8
      %s461 = smul.addr %s460, 8
      %s462 = scalar_lea.vmem %s0, %s461
      %p463 = scmp.lt.s32.totalorder %s25, 1
      %s464 = scalar_select %p463, %s25, 1
      %s465 = smul.addr %s464, 8
      %s466 = smul.addr %s465, 8
      %s467 = scalar_lea.vmem %s14, %s466
      %v469 = vld [vmem:[%s462] sm:$0xff]
      %v470 = vld [vmem:[%s462 + $0x8] sm:$0xff]
      %v471 = vld [vmem:[%s462 + $0x10] sm:$0xff]
      %v472 = vld [vmem:[%s462 + $0x18] sm:$0xff]
      %v473 = vld [vmem:[%s462 + $0x20] sm:$0xff]
      %v474 = vld [vmem:[%s462 + $0x28] sm:$0xff]
      %v475 = vld [vmem:[%s462 + $0x30] sm:$0xff]
      %v476 = vld [vmem:[%s462 + $0x38] sm:$0xff]
      %v477 = vld [vmem:[%s1] sm:$0x1]
      %v478 = vld [vmem:[%s2] sm:$0x1]
      %vm479 = vcmask 261120
      %v480 = vsel %vm479, %v469, 0.0
      %481 = vadd.xlane.f32.xlu0 %v480
      %v482 = vpop.xlane.xlu0 %481
      %v483 = vsel %vm479, %v470, 0.0
      %484 = vadd.xlane.f32.xlu0 %v483
      %v485 = vpop.xlane.xlu0 %484
      %v486 = vsel %vm479, %v471, 0.0
      %487 = vadd.xlane.f32.xlu0 %v486
      %v488 = vpop.xlane.xlu0 %487
      %v489 = vsel %vm479, %v472, 0.0
      %490 = vadd.xlane.f32.xlu0 %v489
      %v491 = vpop.xlane.xlu0 %490
      %v492 = vsel %vm479, %v473, 0.0
      %493 = vadd.xlane.f32.xlu0 %v492
      %v494 = vpop.xlane.xlu0 %493
      %v495 = vsel %vm479, %v474, 0.0
      %496 = vadd.xlane.f32.xlu0 %v495
      %v497 = vpop.xlane.xlu0 %496
      %v498 = vsel %vm479, %v475, 0.0
      %499 = vadd.xlane.f32.xlu0 %v498
      %v500 = vpop.xlane.xlu0 %499
      %v501 = vsel %vm479, %v476, 0.0
      %502 = vadd.xlane.f32.xlu0 %v501
      %v503 = vpop.xlane.xlu0 %502
      %v504 = vrcp.pop 32.0
      %v505 = vmul.f32 %v482, %v504
      %v506 = vmul.f32 %v485, %v504
      %v507 = vmul.f32 %v488, %v504
      %v508 = vmul.f32 %v491, %v504
      %v509 = vmul.f32 %v494, %v504
      %v510 = vmul.f32 %v497, %v504
      %v511 = vmul.f32 %v500, %v504
      %v512 = vmul.f32 %v503, %v504
      %v513 = vsub.f32 %v469, %v505
      %v514 = vsub.f32 %v470, %v506
      %v515 = vsub.f32 %v471, %v507
      %v516 = vsub.f32 %v472, %v508
      %v517 = vsub.f32 %v473, %v509
      %v518 = vsub.f32 %v474, %v510
      %v519 = vsub.f32 %v475, %v511
      %v520 = vsub.f32 %v476, %v512
      %v521 = vmul.f32 %v513, %v513
      %v522 = vmul.f32 %v514, %v514
      %v523 = vmul.f32 %v515, %v515
      %v524 = vmul.f32 %v516, %v516
      %v525 = vmul.f32 %v517, %v517
      %v526 = vmul.f32 %v518, %v518
      %v527 = vmul.f32 %v519, %v519
      %v528 = vmul.f32 %v520, %v520
      %v529 = vsel %vm479, %v521, 0.0
      %530 = vadd.xlane.f32.xlu0 %v529
      %v531 = vpop.xlane.xlu0 %530
      %v532 = vsel %vm479, %v522, 0.0
      %533 = vadd.xlane.f32.xlu0 %v532
      %v534 = vpop.xlane.xlu0 %533
      %v535 = vsel %vm479, %v523, 0.0
      %536 = vadd.xlane.f32.xlu0 %v535
      %v537 = vpop.xlane.xlu0 %536
      %v538 = vsel %vm479, %v524, 0.0
      %539 = vadd.xlane.f32.xlu0 %v538
      %v540 = vpop.xlane.xlu0 %539
      %v541 = vsel %vm479, %v525, 0.0
      %542 = vadd.xlane.f32.xlu0 %v541
      %v543 = vpop.xlane.xlu0 %542
      %v544 = vsel %vm479, %v526, 0.0
      %545 = vadd.xlane.f32.xlu0 %v544
      %v546 = vpop.xlane.xlu0 %545
      %v547 = vsel %vm479, %v527, 0.0
      %548 = vadd.xlane.f32.xlu0 %v547
      %v549 = vpop.xlane.xlu0 %548
      %v550 = vsel %vm479, %v528, 0.0
      %551 = vadd.xlane.f32.xlu0 %v550
      %v552 = vpop.xlane.xlu0 %551
      %v553 = vmul.f32 %v531, %v504
      %v554 = vmul.f32 %v534, %v504
      %v555 = vmul.f32 %v537, %v504
      %v556 = vmul.f32 %v540, %v504
      %v557 = vmul.f32 %v543, %v504
      %v558 = vmul.f32 %v546, %v504
      %v559 = vmul.f32 %v549, %v504
      %v560 = vmul.f32 %v552, %v504
      %v561 = vadd.f32 %v553, 1e-05
      %v562 = vadd.f32 %v554, 1e-05
      %v563 = vadd.f32 %v555, 1e-05
      %v564 = vadd.f32 %v556, 1e-05
      %v565 = vadd.f32 %v557, 1e-05
      %v566 = vadd.f32 %v558, 1e-05
      %v567 = vadd.f32 %v559, 1e-05
      %v568 = vadd.f32 %v560, 1e-05
      %v569 = vrsqrt.pop %v561
      %v570 = vrsqrt.pop %v562
      %v571 = vrsqrt.pop %v563
      %v572 = vrsqrt.pop %v564
      %v573 = vrsqrt.pop %v565
      %v574 = vrsqrt.pop %v566
      %v575 = vrsqrt.pop %v567
      %v576 = vrsqrt.pop %v568
      %v577 = vmul.f32 %v513, %v569
      %v578 = vmul.f32 %v514, %v570
      %v579 = vmul.f32 %v515, %v571
      %v580 = vmul.f32 %v516, %v572
      %v581 = vmul.f32 %v517, %v573
      %v582 = vmul.f32 %v518, %v574
      %v583 = vmul.f32 %v519, %v575
      %v584 = vmul.f32 %v520, %v576
      %v586 = vlaneseq
      %v587 = vshrl.u32 %v586, 7
      %v588 = vsub.s32 0, %v587
      %v589 = vrot.slane %v477, %v588
      %v591 = vmul.f32 %v577, %v589
      %v592 = vmul.f32 %v578, %v589
      %v593 = vmul.f32 %v579, %v589
      %v594 = vmul.f32 %v580, %v589
      %v595 = vmul.f32 %v581, %v589
      %v596 = vmul.f32 %v582, %v589
      %v597 = vmul.f32 %v583, %v589
      %v598 = vmul.f32 %v584, %v589
      %v600 = vlaneseq
      %v601 = vshrl.u32 %v600, 7
      %v602 = vsub.s32 0, %v601
      %v603 = vrot.slane %v478, %v602
      %v605 = vadd.f32 %v591, %v603
      %v606 = vadd.f32 %v592, %v603
      %v607 = vadd.f32 %v593, %v603
      %v608 = vadd.f32 %v594, %v603
      %v609 = vadd.f32 %v595, %v603
      %v610 = vadd.f32 %v596, %v603
      %v611 = vadd.f32 %v597, %v603
      %v612 = vadd.f32 %v598, %v603
      %v613 = vpack.c.bf16 %v606, %v605
      %v614 = vpack.c.bf16 %v608, %v607
      %v615 = vpack.c.bf16 %v610, %v609
      %v616 = vpack.c.bf16 %v612, %v611
      %v617 = vld [vmem:[%s3] sm:$0xf]
      %v618 = vld [vmem:[%s3 + $0x4] sm:$0xf]
      %v619 = vld [vmem:[%s3 + $0x8] sm:$0xf]
      %v620 = vld [vmem:[%s3 + $0xc] sm:$0xf]
      %v621 = vld [vmem:[%s4] sm:$0x1]
      %v623 = vlaneseq
      %v624 = vshrl.u32 %v623, 7
      %v625 = vsub.s32 0, %v624
      %v626 = vrot.slane %v621, %v625
      %v632 = vunpack.c.l.b16 %v617
      %v633 = vunpack.c.l.b16 %v618
      %v634 = vunpack.c.l.b16 %v619
      %v635 = vunpack.c.l.b16 %v620
      %v636 = vpack.c.b16 %v633, %v632
      %v637 = vpack.c.b16 %v635, %v634
      %v641 = vsel %vm479, %v613, 0
      %v644 = vsel %vm479, %v614, 0
      %v647 = vsel %vm479, %v615, 0
      %v650 = vsel %vm479, %v616, 0
      %652 = vmatprep.subr.bf16.mxu0 0
      %653 = vmatpush1.bf16.msra.mxu0 %v636
      %654 = vmatprep.subr.bf16.mxu0 0
      %655 = vmatpush1.bf16.msra.mxu0 %v637
      %656 = vmatprep.subr.bf16.mxu0 0
      %657 = vmatpush1.bf16.msra.mxu0 0
      %658 = vmatprep.subr.bf16.mxu0 0
      %659 = vmatpush1.bf16.msra.mxu0 0
      %660 = vmatprep.subr.bf16.mxu0 0
      %661 = vmatpush1.bf16.msra.mxu0 0
      %662 = vmatprep.subr.bf16.mxu0 0
      %663 = vmatpush1.bf16.msra.mxu0 0
      %664 = vmatprep.subr.bf16.mxu0 0
      %665 = vmatpush1.bf16.msra.mxu0 0
      %666 = vmatprep.subr.bf16.mxu0 0
      %667 = vmatpush1.bf16.msra.mxu0 0
      %668 = vmatprep.subr.bf16.mxu0 0
      %669 = vmatpush1.bf16.msra.mxu0 0
      %670 = vmatprep.subr.bf16.mxu0 0
      %671 = vmatpush1.bf16.msra.mxu0 0
      %672 = vmatprep.subr.bf16.mxu0 0
      %673 = vmatpush1.bf16.msra.mxu0 0
      %674 = vmatprep.subr.bf16.mxu0 0
      %675 = vmatpush1.bf16.msra.mxu0 0
      %676 = vmatprep.subr.bf16.mxu0 0
      %677 = vmatpush1.bf16.msra.mxu0 0
      %678 = vmatprep.subr.bf16.mxu0 0
      %679 = vmatpush1.bf16.msra.mxu0 0
      %680 = vmatprep.subr.bf16.mxu0 0
      %681 = vmatpush1.bf16.msra.mxu0 0
      %682 = vmatprep.subr.bf16.mxu0 0
      %683 = vmatpush1.bf16.msra.mxu0 0
      %684 = vmatprep.mubr.bf16.mxu0 0
      %685 = vmatmul.mubr.bf16.gmra.mrb[0].mxu0 %v641
      %v686 = vpop.f32.mrb[0].mxu0
      %v687 = vadd.f32 %v626, %v686
      %v688 = vpop.f32.mrb[0].mxu0
      %v689 = vpop.f32.mrb[0].mxu0
      %v690 = vadd.f32 %v626, %v689
      %v691 = vpop.f32.mrb[0].mxu0
      %692 = vmatprep.mubr.bf16.mxu0 0
      %693 = vmatmul.mubr.bf16.gmra.mrb[0].mxu0 %v644
      %v694 = vpop.f32.mrb[0].mxu0
      %v695 = vadd.f32 %v626, %v694
      %v696 = vpop.f32.mrb[0].mxu0
      %v697 = vpop.f32.mrb[0].mxu0
      %v698 = vadd.f32 %v626, %v697
      %v699 = vpop.f32.mrb[0].mxu0
      %700 = vmatprep.mubr.bf16.mxu0 0
      %701 = vmatmul.mubr.bf16.gmra.mrb[0].mxu0 %v647
      %v702 = vpop.f32.mrb[0].mxu0
      %v703 = vadd.f32 %v626, %v702
      %v704 = vpop.f32.mrb[0].mxu0
      %v705 = vpop.f32.mrb[0].mxu0
      %v706 = vadd.f32 %v626, %v705
      %v707 = vpop.f32.mrb[0].mxu0
      %708 = vmatprep.mubr.bf16.mxu0 0
      %709 = vmatmul.mubr.bf16.gmra.mrb[0].mxu0 %v650
      %v710 = vpop.f32.mrb[0].mxu0
      %v711 = vadd.f32 %v626, %v710
      %v712 = vpop.f32.mrb[0].mxu0
      %v713 = vpop.f32.mrb[0].mxu0
      %v714 = vadd.f32 %v626, %v713
      %v715 = vpop.f32.mrb[0].mxu0
      %716 = vdwg.mxu0
      %v717 = vpack.c.bf16 %v690, %v687
      %v718 = vpack.c.bf16 %v698, %v695
      %v719 = vpack.c.bf16 %v706, %v703
      %v720 = vpack.c.bf16 %v714, %v711
      %v721 = vmul.f32 %v687, %v687
      %v722 = vmul.f32 %v690, %v690
      %v723 = vmul.f32 %v695, %v695
      %v724 = vmul.f32 %v698, %v698
      %v725 = vmul.f32 %v703, %v703
      %v726 = vmul.f32 %v706, %v706
      %v727 = vmul.f32 %v711, %v711
      %v728 = vmul.f32 %v714, %v714
      %vm729 = vcmask 523520
      %v730 = vsel %vm729, %v721, 0.0
      %v731 = vsel %vm729, %v722, 0.0
      %v732 = vadd.f32 %v730, %v731
      %v733 = vsel %vm729, %v723, 0.0
      %v734 = vadd.f32 %v732, %v733
      %v735 = vsel %vm729, %v724, 0.0
      %v736 = vadd.f32 %v734, %v735
      %v737 = vsel %vm729, %v725, 0.0
      %v738 = vadd.f32 %v736, %v737
      %v739 = vsel %vm729, %v726, 0.0
      %v740 = vadd.f32 %v738, %v739
      %v741 = vsel %vm729, %v727, 0.0
      %v742 = vadd.f32 %v740, %v741
      %v743 = vsel %vm729, %v728, 0.0
      %v744 = vadd.f32 %v742, %v743
      %v745 = vrot.slane %v744, 4
      %v746 = vadd.f32 %v744, %v745
      %v747 = vrot.slane %v746, 2
      %v748 = vadd.f32 %v746, %v747
      %v749 = vrot.slane %v748, 1
      %v750 = vadd.f32 %v748, %v749
      %v751 = vmax.f32 %v750, 1e-24
      %v752 = vrsqrt.pop %v751
      %v753 = vsel %vm479, %v721, 0.0
      %v754 = vsel %vm479, %v722, 0.0
      %v755 = vadd.f32 %v753, %v754
      %v756 = vsel %vm479, %v723, 0.0
      %v757 = vadd.f32 %v755, %v756
      %v758 = vsel %vm479, %v724, 0.0
      %v759 = vadd.f32 %v757, %v758
      %v760 = vsel %vm479, %v725, 0.0
      %v761 = vadd.f32 %v759, %v760
      %v762 = vsel %vm479, %v726, 0.0
      %v763 = vadd.f32 %v761, %v762
      %v764 = vsel %vm479, %v727, 0.0
      %v765 = vadd.f32 %v763, %v764
      %v766 = vsel %vm479, %v728, 0.0
      %v767 = vadd.f32 %v765, %v766
      %v768 = vrot.slane %v767, 4
      %v769 = vadd.f32 %v767, %v768
      %v770 = vrot.slane %v769, 2
      %v771 = vadd.f32 %v769, %v770
      %v772 = vrot.slane %v771, 1
      %v773 = vadd.f32 %v771, %v772
      %v774 = vmax.f32 %v773, 1e-24
      %v775 = vrsqrt.pop %v774
      %v776 = vmul.f32 %v775, 0.35355338
      %v777 = vmul.f32 %v687, %v752
      %v778 = vmul.f32 %v690, %v752
      %v779 = vmul.f32 %v695, %v752
      %v780 = vmul.f32 %v698, %v752
      %v781 = vmul.f32 %v703, %v752
      %v782 = vmul.f32 %v706, %v752
      %v783 = vmul.f32 %v711, %v752
      %v784 = vmul.f32 %v714, %v752
      %v785 = vpack.c.bf16 %v778, %v777
      %v786 = vpack.c.bf16 %v780, %v779
      %v787 = vpack.c.bf16 %v782, %v781
      %v788 = vpack.c.bf16 %v784, %v783
      %793 = vrot.lane.b32.xlu0 %v785, 96
      %v794 = vpop.permute.xlu0 %793
      %795 = vrot.lane.b32.xlu0 %v786, 96
      %v796 = vpop.permute.xlu0 %795
      %797 = vrot.lane.b32.xlu0 %v787, 96
      %v798 = vpop.permute.xlu0 %797
      %799 = vrot.lane.b32.xlu0 %v788, 96
      %v800 = vpop.permute.xlu0 %799
      %805 = vxpose.xlu0.c.b16.start [1/8] %v794, 128
      %806 = vxpose.xlu0.c.b16.cont [2/8] %v796, 128
      %807 = vxpose.xlu0.c.b16.cont [3/8] %v798, 128
      %808 = vxpose.xlu0.c.b16.cont [4/8] %v800, 128
      %809 = vxpose.xlu0.c.b16.cont [5/8] 0, 128
      %810 = vxpose.xlu0.c.b16.cont [6/8] 0, 128
      %811 = vxpose.xlu0.c.b16.cont [7/8] 0, 128
      %812 = vxpose.xlu0.c.b16.end [8/8] 0, 128
      %v813 = vpop.trf.xlu0
      %v814 = vpop.trf.xlu0
      %v815 = vpop.trf.xlu0
      %v816 = vpop.trf.xlu0
      %v817 = vpop.trf.xlu0
      %v818 = vpop.trf.xlu0
      %v819 = vpop.trf.xlu0
      %v820 = vpop.trf.xlu0
      %vm821 = vcmask 523264
      %v823 = vsel %vm821, %v813, 0
      %v826 = vsel %vm821, %v814, 0
      %828 = vmatprep.subr.bf16.mxu0 0
      %829 = vmatpush1.bf16.msra.mxu0 %v717
      %830 = vmatprep.subr.bf16.mxu0 0
      %831 = vmatpush1.bf16.msra.mxu0 %v718
      %832 = vmatprep.subr.bf16.mxu0 0
      %833 = vmatpush1.bf16.msra.mxu0 %v719
      %834 = vmatprep.subr.bf16.mxu0 0
      %835 = vmatpush1.bf16.msra.mxu0 %v720
      %836 = vmatprep.subr.bf16.mxu0 0
      %837 = vmatpush1.bf16.msra.mxu0 0
      %838 = vmatprep.subr.bf16.mxu0 0
      %839 = vmatpush1.bf16.msra.mxu0 0
      %840 = vmatprep.subr.bf16.mxu0 0
      %841 = vmatpush1.bf16.msra.mxu0 0
      %842 = vmatprep.subr.bf16.mxu0 0
      %843 = vmatpush1.bf16.msra.mxu0 0
      %844 = vmatprep.subr.bf16.mxu0 0
      %845 = vmatpush1.bf16.msra.mxu0 0
      %846 = vmatprep.subr.bf16.mxu0 0
      %847 = vmatpush1.bf16.msra.mxu0 0
      %848 = vmatprep.subr.bf16.mxu0 0
      %849 = vmatpush1.bf16.msra.mxu0 0
      %850 = vmatprep.subr.bf16.mxu0 0
      %851 = vmatpush1.bf16.msra.mxu0 0
      %852 = vmatprep.subr.bf16.mxu0 0
      %853 = vmatpush1.bf16.msra.mxu0 0
      %854 = vmatprep.subr.bf16.mxu0 0
      %855 = vmatpush1.bf16.msra.mxu0 0
      %856 = vmatprep.subr.bf16.mxu0 0
      %857 = vmatpush1.bf16.msra.mxu0 0
      %858 = vmatprep.subr.bf16.mxu0 0
      %859 = vmatpush1.bf16.msra.mxu0 0
      %860 = vmatprep.mubr.bf16.mxu0 0
      %861 = vmatmul.mubr.bf16.gmra.mrb[0].mxu0 %v823
      %v862 = vpop.f32.mrb[0].mxu0
      %v863 = vadd.f32 0.0, %v862
      %v864 = vpop.f32.mrb[0].mxu0
      %v865 = vpop.f32.mrb[0].mxu0
      %v866 = vadd.f32 0.0, %v865
      %v867 = vpop.f32.mrb[0].mxu0
      %868 = vmatprep.mubr.bf16.mxu0 0
      %869 = vmatmul.mubr.bf16.gmra.mrb[0].mxu0 %v826
      %v870 = vpop.f32.mrb[0].mxu0
      %v871 = vadd.f32 0.0, %v870
      %v872 = vpop.f32.mrb[0].mxu0
      %v873 = vpop.f32.mrb[0].mxu0
      %v874 = vadd.f32 0.0, %v873
      %v875 = vpop.f32.mrb[0].mxu0
      %876 = vdwg.mxu0
      %v877 = vmul.f32 %v863, %v776
      %v878 = vmul.f32 %v866, %v776
      %v879 = vmul.f32 %v871, %v776
      %v880 = vmul.f32 %v874, %v776
      %v881 = vlaneseq
      %v882 = vshrl.u32 %v881, 7
      %v883 = vadd.s32 %v882, 8
      %v884 = vadd.s32 %v882, 16
      %v885 = vadd.s32 %v882, 24
      %v886 = vcvt.s32.f32 %v882
      %v887 = vcvt.s32.f32 %v883
      %v888 = vcvt.s32.f32 %v884
      %v889 = vcvt.s32.f32 %v885
      %v890 = vlaneseq
      %v891 = vand.u32 %v890, 127
      %v892 = vcvt.s32.f32 %v891
      %v893 = vadd.f32 %v886, 0.5
      %v894 = vadd.f32 %v887, 0.5
      %v895 = vadd.f32 %v888, 0.5
      %v896 = vadd.f32 %v889, 0.5
      %v897 = vmul.f32 %v893, 0.125
      %v898 = vmul.f32 %v894, 0.125
      %v899 = vmul.f32 %v895, 0.125
      %v900 = vmul.f32 %v896, 0.125
      %v901 = vfloor.f32 %v897
      %v902 = vfloor.f32 %v898
      %v903 = vfloor.f32 %v899
      %v904 = vfloor.f32 %v900
      %v905 = vadd.f32 %v892, 0.5
      %v906 = vmul.f32 %v905, 0.125
      %v907 = vfloor.f32 %v906
      %vm908 = vcmp.eq.f32.partialorder %v901, %v907
      %vm909 = vcmp.eq.f32.partialorder %v902, %v907
      %vm910 = vcmp.eq.f32.partialorder %v903, %v907
      %vm911 = vcmp.eq.f32.partialorder %v904, %v907
      %v912 = vmul.f32 %v877, 1.442695
      %v913 = vpow.pop %v912
      %v914 = vmul.f32 %v878, 1.442695
      %v915 = vpow.pop %v914
      %v916 = vmul.f32 %v879, 1.442695
      %v917 = vpow.pop %v916
      %v918 = vmul.f32 %v880, 1.442695
      %v919 = vpow.pop %v918
      %v920 = vsel %vm908, %v913, 0.0
      %v921 = vsel %vm909, %v915, 0.0
      %v922 = vsel %vm910, %v917, 0.0
      %v923 = vsel %vm911, %v919, 0.0
      %v924 = vsel %vm479, %v920, 0.0
      %925 = vadd.xlane.f32.xlu0 %v924
      %v926 = vpop.xlane.xlu0 %925
      %v927 = vsel %vm479, %v921, 0.0
      %928 = vadd.xlane.f32.xlu0 %v927
      %v929 = vpop.xlane.xlu0 %928
      %v930 = vsel %vm479, %v922, 0.0
      %931 = vadd.xlane.f32.xlu0 %v930
      %v932 = vpop.xlane.xlu0 %931
      %v933 = vsel %vm479, %v923, 0.0
      %934 = vadd.xlane.f32.xlu0 %v933
      %v935 = vpop.xlane.xlu0 %934
      %v936 = vrcp.pop %v926
      %v937 = vrcp.pop %v929
      %v938 = vrcp.pop %v932
      %v939 = vrcp.pop %v935
      %v940 = vmul.f32 %v920, %v936
      %v941 = vmul.f32 %v921, %v937
      %v942 = vmul.f32 %v922, %v938
      %v943 = vmul.f32 %v923, %v939
      %v944 = vpack.c.bf16 %v941, %v940
      %v945 = vpack.c.bf16 %v943, %v942
      %950 = vrot.lane.b32.xlu0 %v717, 64
      %v951 = vpop.permute.xlu0 %950
      %952 = vrot.lane.b32.xlu0 %v718, 64
      %v953 = vpop.permute.xlu0 %952
      %954 = vrot.lane.b32.xlu0 %v719, 64
      %v955 = vpop.permute.xlu0 %954
      %956 = vrot.lane.b32.xlu0 %v720, 64
      %v957 = vpop.permute.xlu0 %956
      %v959 = vsel %vm479, %v944, 0
      %v962 = vsel %vm479, %v945, 0
      %v965 = vsel %vm479, %v951, 0
      %v968 = vsel %vm479, %v953, 0
      %v971 = vsel %vm479, %v955, 0
      %v974 = vsel %vm479, %v957, 0
      %976 = vmatprep.subr.bf16.mxu0 0
      %977 = vmatpush1.bf16.xpose.msra.mxu0 %v965
      %978 = vmatprep.subr.bf16.mxu0 0
      %979 = vmatpush1.bf16.xpose.msra.mxu0 %v968
      %980 = vmatprep.subr.bf16.mxu0 0
      %981 = vmatpush1.bf16.xpose.msra.mxu0 %v971
      %982 = vmatprep.subr.bf16.mxu0 0
      %983 = vmatpush1.bf16.xpose.msra.mxu0 %v974
      %984 = vmatprep.subr.bf16.mxu0 0
      %985 = vmatpush1.bf16.xpose.msra.mxu0 0
      %986 = vmatprep.subr.bf16.mxu0 0
      %987 = vmatpush1.bf16.xpose.msra.mxu0 0
      %988 = vmatprep.subr.bf16.mxu0 0
      %989 = vmatpush1.bf16.xpose.msra.mxu0 0
      %990 = vmatprep.subr.bf16.mxu0 0
      %991 = vmatpush1.bf16.xpose.msra.mxu0 0
      %992 = vmatprep.subr.bf16.mxu0 0
      %993 = vmatpush1.bf16.xpose.msra.mxu0 0
      %994 = vmatprep.subr.bf16.mxu0 0
      %995 = vmatpush1.bf16.xpose.msra.mxu0 0
      %996 = vmatprep.subr.bf16.mxu0 0
      %997 = vmatpush1.bf16.xpose.msra.mxu0 0
      %998 = vmatprep.subr.bf16.mxu0 0
      %999 = vmatpush1.bf16.xpose.msra.mxu0 0
      %1000 = vmatprep.subr.bf16.mxu0 0
      %1001 = vmatpush1.bf16.xpose.msra.mxu0 0
      %1002 = vmatprep.subr.bf16.mxu0 0
      %1003 = vmatpush1.bf16.xpose.msra.mxu0 0
      %1004 = vmatprep.subr.bf16.mxu0 0
      %1005 = vmatpush1.bf16.xpose.msra.mxu0 0
      %1006 = vmatprep.subr.bf16.mxu0 0
      %1007 = vmatpush1.bf16.xpose.msra.mxu0 0
      %1008 = vmatprep.mubr.bf16.mxu0 0
      %1009 = vmatmul.mubr.bf16.gmra.mrb[0].mxu0 %v959
      %v1010 = vpop.f32.mrb[0].mxu0
      %v1011 = vadd.f32 0.0, %v1010
      %v1012 = vpop.f32.mrb[0].mxu0
      %v1013 = vpop.f32.mrb[0].mxu0
      %v1014 = vadd.f32 0.0, %v1013
      %v1015 = vpop.f32.mrb[0].mxu0
      %1016 = vmatprep.mubr.bf16.mxu0 0
      %1017 = vmatmul.mubr.bf16.gmra.mrb[0].mxu0 %v962
      %v1018 = vpop.f32.mrb[0].mxu0
      %v1019 = vadd.f32 0.0, %v1018
      %v1020 = vpop.f32.mrb[0].mxu0
      %v1021 = vpop.f32.mrb[0].mxu0
      %v1022 = vadd.f32 0.0, %v1021
      %v1023 = vpop.f32.mrb[0].mxu0
      %1024 = vdwg.mxu0
      %v1025 = vld [vmem:[%s5] sm:$0xf]
      %v1026 = vld [vmem:[%s5 + $0x4] sm:$0xf]
      %v1027 = vld [vmem:[%s5 + $0x8] sm:$0xf]
      %v1028 = vld [vmem:[%s5 + $0xc] sm:$0xf]
      %v1029 = vld [vmem:[%s5 + $0x10] sm:$0xf]
      %v1030 = vld [vmem:[%s5 + $0x14] sm:$0xf]
      %v1031 = vld [vmem:[%s5 + $0x18] sm:$0xf]
      %v1032 = vld [vmem:[%s5 + $0x1c] sm:$0xf]
      %v1033 = vpack.c.bf16 %v1014, %v1011
      %v1034 = vpack.c.bf16 %v1022, %v1019
      %v1043 = vunpack.c.l.b16 %v1025
      %v1044 = vunpack.c.l.b16 %v1026
      %v1045 = vunpack.c.l.b16 %v1027
      %v1046 = vunpack.c.l.b16 %v1028
      %v1047 = vunpack.c.l.b16 %v1029
      %v1048 = vunpack.c.l.b16 %v1030
      %v1049 = vunpack.c.l.b16 %v1031
      %v1050 = vunpack.c.l.b16 %v1032
      %v1051 = vpack.c.b16 %v1044, %v1043
      %v1052 = vpack.c.b16 %v1046, %v1045
      %v1053 = vpack.c.b16 %v1048, %v1047
      %v1054 = vpack.c.b16 %v1050, %v1049
      %1055 = vrot.lane.b32.xlu0 %v1051, 96
      %v1056 = vpop.permute.xlu0 %1055
      %1057 = vrot.lane.b32.xlu0 %v1052, 96
      %v1058 = vpop.permute.xlu0 %1057
      %1059 = vrot.lane.b32.xlu0 %v1053, 96
      %v1060 = vpop.permute.xlu0 %1059
      %1061 = vrot.lane.b32.xlu0 %v1054, 96
      %v1062 = vpop.permute.xlu0 %1061
      %1065 = vrot.lane.b32.xlu0 %v1033, 96
      %v1066 = vpop.permute.xlu0 %1065
      %1067 = vrot.lane.b32.xlu0 %v1034, 96
      %v1068 = vpop.permute.xlu0 %1067
      %v1072 = vsel %vm479, %v1056, 0
      %v1075 = vsel %vm479, %v1058, 0
      %v1078 = vsel %vm479, %v1060, 0
      %v1081 = vsel %vm479, %v1062, 0
      %1083 = vmatprep.subr.bf16.mxu0 0
      %1084 = vmatpush1.bf16.msra.mxu0 %v1066
      %1085 = vmatprep.subr.bf16.mxu0 0
      %1086 = vmatpush1.bf16.msra.mxu0 %v1068
      %1087 = vmatprep.subr.bf16.mxu0 0
      %1088 = vmatpush1.bf16.msra.mxu0 0
      %1089 = vmatprep.subr.bf16.mxu0 0
      %1090 = vmatpush1.bf16.msra.mxu0 0
      %1091 = vmatprep.subr.bf16.mxu0 0
      %1092 = vmatpush1.bf16.msra.mxu0 0
      %1093 = vmatprep.subr.bf16.mxu0 0
      %1094 = vmatpush1.bf16.msra.mxu0 0
      %1095 = vmatprep.subr.bf16.mxu0 0
      %1096 = vmatpush1.bf16.msra.mxu0 0
      %1097 = vmatprep.subr.bf16.mxu0 0
      %1098 = vmatpush1.bf16.msra.mxu0 0
      %1099 = vmatprep.subr.bf16.mxu0 0
      %1100 = vmatpush1.bf16.msra.mxu0 0
      %1101 = vmatprep.subr.bf16.mxu0 0
      %1102 = vmatpush1.bf16.msra.mxu0 0
      %1103 = vmatprep.subr.bf16.mxu0 0
      %1104 = vmatpush1.bf16.msra.mxu0 0
      %1105 = vmatprep.subr.bf16.mxu0 0
      %1106 = vmatpush1.bf16.msra.mxu0 0
      %1107 = vmatprep.subr.bf16.mxu0 0
      %1108 = vmatpush1.bf16.msra.mxu0 0
      %1109 = vmatprep.subr.bf16.mxu0 0
      %1110 = vmatpush1.bf16.msra.mxu0 0
      %1111 = vmatprep.subr.bf16.mxu0 0
      %1112 = vmatpush1.bf16.msra.mxu0 0
      %1113 = vmatprep.subr.bf16.mxu0 0
      %1114 = vmatpush1.bf16.msra.mxu0 0
      %1115 = vmatprep.mubr.bf16.mxu0 0
      %1116 = vmatmul.mubr.bf16.gmra.mrb[0].mxu0 %v1072
      %v1117 = vpop.f32.mrb[0].mxu0
      %v1118 = vadd.f32 0.0, %v1117
      %v1119 = vpop.f32.mrb[0].mxu0
      %v1120 = vpop.f32.mrb[0].mxu0
      %v1121 = vadd.f32 0.0, %v1120
      %v1122 = vpop.f32.mrb[0].mxu0
      %1123 = vmatprep.mubr.bf16.mxu0 0
      %1124 = vmatmul.mubr.bf16.gmra.mrb[0].mxu0 %v1075
      %v1125 = vpop.f32.mrb[0].mxu0
      %v1126 = vadd.f32 0.0, %v1125
      %v1127 = vpop.f32.mrb[0].mxu0
      %v1128 = vpop.f32.mrb[0].mxu0
      %v1129 = vadd.f32 0.0, %v1128
      %v1130 = vpop.f32.mrb[0].mxu0
      %1131 = vmatprep.mubr.bf16.mxu0 0
      %1132 = vmatmul.mubr.bf16.gmra.mrb[0].mxu0 %v1078
      %v1133 = vpop.f32.mrb[0].mxu0
      %v1134 = vadd.f32 0.0, %v1133
      %v1135 = vpop.f32.mrb[0].mxu0
      %v1136 = vpop.f32.mrb[0].mxu0
      %v1137 = vadd.f32 0.0, %v1136
      %v1138 = vpop.f32.mrb[0].mxu0
      %1139 = vmatprep.mubr.bf16.mxu0 0
      %1140 = vmatmul.mubr.bf16.gmra.mrb[0].mxu0 %v1081
      %v1141 = vpop.f32.mrb[0].mxu0
      %v1142 = vadd.f32 0.0, %v1141
      %v1143 = vpop.f32.mrb[0].mxu0
      %v1144 = vpop.f32.mrb[0].mxu0
      %v1145 = vadd.f32 0.0, %v1144
      %v1146 = vpop.f32.mrb[0].mxu0
      %1147 = vdwg.mxu0
      %v1149 = vsel %vm479, %v1051, 0
      %v1152 = vsel %vm479, %v1052, 0
      %v1155 = vsel %vm479, %v1053, 0
      %v1158 = vsel %vm479, %v1054, 0
      %1160 = vmatprep.subr.bf16.mxu0 0
      %1161 = vmatpush1.bf16.msra.mxu0 %v1033
      %1162 = vmatprep.subr.bf16.mxu0 0
      %1163 = vmatpush1.bf16.msra.mxu0 %v1034
      %1164 = vmatprep.subr.bf16.mxu0 0
      %1165 = vmatpush1.bf16.msra.mxu0 0
      %1166 = vmatprep.subr.bf16.mxu0 0
      %1167 = vmatpush1.bf16.msra.mxu0 0
      %1168 = vmatprep.subr.bf16.mxu0 0
      %1169 = vmatpush1.bf16.msra.mxu0 0
      %1170 = vmatprep.subr.bf16.mxu0 0
      %1171 = vmatpush1.bf16.msra.mxu0 0
      %1172 = vmatprep.subr.bf16.mxu0 0
      %1173 = vmatpush1.bf16.msra.mxu0 0
      %1174 = vmatprep.subr.bf16.mxu0 0
      %1175 = vmatpush1.bf16.msra.mxu0 0
      %1176 = vmatprep.subr.bf16.mxu0 0
      %1177 = vmatpush1.bf16.msra.mxu0 0
      %1178 = vmatprep.subr.bf16.mxu0 0
      %1179 = vmatpush1.bf16.msra.mxu0 0
      %1180 = vmatprep.subr.bf16.mxu0 0
      %1181 = vmatpush1.bf16.msra.mxu0 0
      %1182 = vmatprep.subr.bf16.mxu0 0
      %1183 = vmatpush1.bf16.msra.mxu0 0
      %1184 = vmatprep.subr.bf16.mxu0 0
      %1185 = vmatpush1.bf16.msra.mxu0 0
      %1186 = vmatprep.subr.bf16.mxu0 0
      %1187 = vmatpush1.bf16.msra.mxu0 0
      %1188 = vmatprep.subr.bf16.mxu0 0
      %1189 = vmatpush1.bf16.msra.mxu0 0
      %1190 = vmatprep.subr.bf16.mxu0 0
      %1191 = vmatpush1.bf16.msra.mxu0 0
      %1192 = vmatprep.mubr.bf16.mxu0 0
      %1193 = vmatmul.mubr.bf16.gmra.mrb[0].mxu0 %v1149
      %v1194 = vpop.f32.mrb[0].mxu0
      %v1195 = vadd.f32 %v1118, %v1194
      %v1196 = vpop.f32.mrb[0].mxu0
      %v1197 = vpop.f32.mrb[0].mxu0
      %v1198 = vadd.f32 %v1121, %v1197
      %v1199 = vpop.f32.mrb[0].mxu0
      %1200 = vmatprep.mubr.bf16.mxu0 0
      %1201 = vmatmul.mubr.bf16.gmra.mrb[0].mxu0 %v1152
      %v1202 = vpop.f32.mrb[0].mxu0
      %v1203 = vadd.f32 %v1126, %v1202
      %v1204 = vpop.f32.mrb[0].mxu0
      %v1205 = vpop.f32.mrb[0].mxu0
      %v1206 = vadd.f32 %v1129, %v1205
      %v1207 = vpop.f32.mrb[0].mxu0
      %1208 = vmatprep.mubr.bf16.mxu0 0
      %1209 = vmatmul.mubr.bf16.gmra.mrb[0].mxu0 %v1155
      %v1210 = vpop.f32.mrb[0].mxu0
      %v1211 = vadd.f32 %v1134, %v1210
      %v1212 = vpop.f32.mrb[0].mxu0
      %v1213 = vpop.f32.mrb[0].mxu0
      %v1214 = vadd.f32 %v1137, %v1213
      %v1215 = vpop.f32.mrb[0].mxu0
      %1216 = vmatprep.mubr.bf16.mxu0 0
      %1217 = vmatmul.mubr.bf16.gmra.mrb[0].mxu0 %v1158
      %v1218 = vpop.f32.mrb[0].mxu0
      %v1219 = vadd.f32 %v1142, %v1218
      %v1220 = vpop.f32.mrb[0].mxu0
      %v1221 = vpop.f32.mrb[0].mxu0
      %v1222 = vadd.f32 %v1145, %v1221
      %v1223 = vpop.f32.mrb[0].mxu0
      %1224 = vdwg.mxu0
      %v1225 = vpack.c.bf16 %v1198, %v1195
      %v1226 = vpack.c.bf16 %v1206, %v1203
      %v1227 = vpack.c.bf16 %v1214, %v1211
      %v1228 = vpack.c.bf16 %v1222, %v1219
      %v1229 = vld [vmem:[%s6] sm:$0xf]
      %v1230 = vld [vmem:[%s6 + $0x4] sm:$0xf]
      %v1231 = vld [vmem:[%s6 + $0x8] sm:$0xf]
      %v1232 = vld [vmem:[%s6 + $0xc] sm:$0xf]
      %v1233 = vld [vmem:[%s7] sm:$0x1]
      %v1235 = vlaneseq
      %v1236 = vshrl.u32 %v1235, 7
      %v1237 = vsub.s32 0, %v1236
      %v1238 = vrot.slane %v1233, %v1237
      %v1244 = vunpack.c.l.b16 %v1229
      %v1245 = vunpack.c.l.b16 %v1230
      %v1246 = vunpack.c.l.b16 %v1231
      %v1247 = vunpack.c.l.b16 %v1232
      %v1248 = vpack.c.b16 %v1245, %v1244
      %v1249 = vpack.c.b16 %v1247, %v1246
      %v1253 = vsel %vm479, %v1225, 0
      %v1256 = vsel %vm479, %v1226, 0
      %v1259 = vsel %vm479, %v1227, 0
      %v1262 = vsel %vm479, %v1228, 0
      %1264 = vmatprep.subr.bf16.mxu0 0
      %1265 = vmatpush1.bf16.msra.mxu0 %v1248
      %1266 = vmatprep.subr.bf16.mxu0 0
      %1267 = vmatpush1.bf16.msra.mxu0 %v1249
      %1268 = vmatprep.subr.bf16.mxu0 0
      %1269 = vmatpush1.bf16.msra.mxu0 0
      %1270 = vmatprep.subr.bf16.mxu0 0
      %1271 = vmatpush1.bf16.msra.mxu0 0
      %1272 = vmatprep.subr.bf16.mxu0 0
      %1273 = vmatpush1.bf16.msra.mxu0 0
      %1274 = vmatprep.subr.bf16.mxu0 0
      %1275 = vmatpush1.bf16.msra.mxu0 0
      %1276 = vmatprep.subr.bf16.mxu0 0
      %1277 = vmatpush1.bf16.msra.mxu0 0
      %1278 = vmatprep.subr.bf16.mxu0 0
      %1279 = vmatpush1.bf16.msra.mxu0 0
      %1280 = vmatprep.subr.bf16.mxu0 0
      %1281 = vmatpush1.bf16.msra.mxu0 0
      %1282 = vmatprep.subr.bf16.mxu0 0
      %1283 = vmatpush1.bf16.msra.mxu0 0
      %1284 = vmatprep.subr.bf16.mxu0 0
      %1285 = vmatpush1.bf16.msra.mxu0 0
      %1286 = vmatprep.subr.bf16.mxu0 0
      %1287 = vmatpush1.bf16.msra.mxu0 0
      %1288 = vmatprep.subr.bf16.mxu0 0
      %1289 = vmatpush1.bf16.msra.mxu0 0
      %1290 = vmatprep.subr.bf16.mxu0 0
      %1291 = vmatpush1.bf16.msra.mxu0 0
      %1292 = vmatprep.subr.bf16.mxu0 0
      %1293 = vmatpush1.bf16.msra.mxu0 0
      %1294 = vmatprep.subr.bf16.mxu0 0
      %1295 = vmatpush1.bf16.msra.mxu0 0
      %1296 = vmatprep.mubr.bf16.mxu0 0
      %1297 = vmatmul.mubr.bf16.gmra.mrb[0].mxu0 %v1253
      %v1298 = vpop.f32.mrb[0].mxu0
      %v1299 = vadd.f32 %v1238, %v1298
      %v1300 = vpop.f32.mrb[0].mxu0
      %v1301 = vpop.f32.mrb[0].mxu0
      %v1302 = vadd.f32 %v1238, %v1301
      %v1303 = vpop.f32.mrb[0].mxu0
      %1304 = vmatprep.mubr.bf16.mxu0 0
      %1305 = vmatmul.mubr.bf16.gmra.mrb[0].mxu0 %v1256
      %v1306 = vpop.f32.mrb[0].mxu0
      %v1307 = vadd.f32 %v1238, %v1306
      %v1308 = vpop.f32.mrb[0].mxu0
      %v1309 = vpop.f32.mrb[0].mxu0
      %v1310 = vadd.f32 %v1238, %v1309
      %v1311 = vpop.f32.mrb[0].mxu0
      %1312 = vmatprep.mubr.bf16.mxu0 0
      %1313 = vmatmul.mubr.bf16.gmra.mrb[0].mxu0 %v1259
      %v1314 = vpop.f32.mrb[0].mxu0
      %v1315 = vadd.f32 %v1238, %v1314
      %v1316 = vpop.f32.mrb[0].mxu0
      %v1317 = vpop.f32.mrb[0].mxu0
      %v1318 = vadd.f32 %v1238, %v1317
      %v1319 = vpop.f32.mrb[0].mxu0
      %1320 = vmatprep.mubr.bf16.mxu0 0
      %1321 = vmatmul.mubr.bf16.gmra.mrb[0].mxu0 %v1262
      %v1322 = vpop.f32.mrb[0].mxu0
      %v1323 = vadd.f32 %v1238, %v1322
      %v1324 = vpop.f32.mrb[0].mxu0
      %v1325 = vpop.f32.mrb[0].mxu0
      %v1326 = vadd.f32 %v1238, %v1325
      %v1327 = vpop.f32.mrb[0].mxu0
      %1328 = vdwg.mxu0
      %v1329 = vadd.f32 %v469, %v1299
      %v1330 = vadd.f32 %v470, %v1302
      %v1331 = vadd.f32 %v471, %v1307
      %v1332 = vadd.f32 %v472, %v1310
      %v1333 = vadd.f32 %v473, %v1315
      %v1334 = vadd.f32 %v474, %v1318
      %v1335 = vadd.f32 %v475, %v1323
      %v1336 = vadd.f32 %v476, %v1326
      %v1337 = vld [vmem:[%s8] sm:$0x1]
      %v1338 = vld [vmem:[%s9] sm:$0x1]
      %v1339 = vsel %vm479, %v1329, 0.0
      %1340 = vadd.xlane.f32.xlu0 %v1339
      %v1341 = vpop.xlane.xlu0 %1340
      %v1342 = vsel %vm479, %v1330, 0.0
      %1343 = vadd.xlane.f32.xlu0 %v1342
      %v1344 = vpop.xlane.xlu0 %1343
      %v1345 = vsel %vm479, %v1331, 0.0
      %1346 = vadd.xlane.f32.xlu0 %v1345
      %v1347 = vpop.xlane.xlu0 %1346
      %v1348 = vsel %vm479, %v1332, 0.0
      %1349 = vadd.xlane.f32.xlu0 %v1348
      %v1350 = vpop.xlane.xlu0 %1349
      %v1351 = vsel %vm479, %v1333, 0.0
      %1352 = vadd.xlane.f32.xlu0 %v1351
      %v1353 = vpop.xlane.xlu0 %1352
      %v1354 = vsel %vm479, %v1334, 0.0
      %1355 = vadd.xlane.f32.xlu0 %v1354
      %v1356 = vpop.xlane.xlu0 %1355
      %v1357 = vsel %vm479, %v1335, 0.0
      %1358 = vadd.xlane.f32.xlu0 %v1357
      %v1359 = vpop.xlane.xlu0 %1358
      %v1360 = vsel %vm479, %v1336, 0.0
      %1361 = vadd.xlane.f32.xlu0 %v1360
      %v1362 = vpop.xlane.xlu0 %1361
      %v1363 = vmul.f32 %v1341, %v504
      %v1364 = vmul.f32 %v1344, %v504
      %v1365 = vmul.f32 %v1347, %v504
      %v1366 = vmul.f32 %v1350, %v504
      %v1367 = vmul.f32 %v1353, %v504
      %v1368 = vmul.f32 %v1356, %v504
      %v1369 = vmul.f32 %v1359, %v504
      %v1370 = vmul.f32 %v1362, %v504
      %v1371 = vsub.f32 %v1329, %v1363
      %v1372 = vsub.f32 %v1330, %v1364
      %v1373 = vsub.f32 %v1331, %v1365
      %v1374 = vsub.f32 %v1332, %v1366
      %v1375 = vsub.f32 %v1333, %v1367
      %v1376 = vsub.f32 %v1334, %v1368
      %v1377 = vsub.f32 %v1335, %v1369
      %v1378 = vsub.f32 %v1336, %v1370
      %v1379 = vmul.f32 %v1371, %v1371
      %v1380 = vmul.f32 %v1372, %v1372
      %v1381 = vmul.f32 %v1373, %v1373
      %v1382 = vmul.f32 %v1374, %v1374
      %v1383 = vmul.f32 %v1375, %v1375
      %v1384 = vmul.f32 %v1376, %v1376
      %v1385 = vmul.f32 %v1377, %v1377
      %v1386 = vmul.f32 %v1378, %v1378
      %v1387 = vsel %vm479, %v1379, 0.0
      %1388 = vadd.xlane.f32.xlu0 %v1387
      %v1389 = vpop.xlane.xlu0 %1388
      %v1390 = vsel %vm479, %v1380, 0.0
      %1391 = vadd.xlane.f32.xlu0 %v1390
      %v1392 = vpop.xlane.xlu0 %1391
      %v1393 = vsel %vm479, %v1381, 0.0
      %1394 = vadd.xlane.f32.xlu0 %v1393
      %v1395 = vpop.xlane.xlu0 %1394
      %v1396 = vsel %vm479, %v1382, 0.0
      %1397 = vadd.xlane.f32.xlu0 %v1396
      %v1398 = vpop.xlane.xlu0 %1397
      %v1399 = vsel %vm479, %v1383, 0.0
      %1400 = vadd.xlane.f32.xlu0 %v1399
      %v1401 = vpop.xlane.xlu0 %1400
      %v1402 = vsel %vm479, %v1384, 0.0
      %1403 = vadd.xlane.f32.xlu0 %v1402
      %v1404 = vpop.xlane.xlu0 %1403
      %v1405 = vsel %vm479, %v1385, 0.0
      %1406 = vadd.xlane.f32.xlu0 %v1405
      %v1407 = vpop.xlane.xlu0 %1406
      %v1408 = vsel %vm479, %v1386, 0.0
      %1409 = vadd.xlane.f32.xlu0 %v1408
      %v1410 = vpop.xlane.xlu0 %1409
      %v1411 = vmul.f32 %v1389, %v504
      %v1412 = vmul.f32 %v1392, %v504
      %v1413 = vmul.f32 %v1395, %v504
      %v1414 = vmul.f32 %v1398, %v504
      %v1415 = vmul.f32 %v1401, %v504
      %v1416 = vmul.f32 %v1404, %v504
      %v1417 = vmul.f32 %v1407, %v504
      %v1418 = vmul.f32 %v1410, %v504
      %v1419 = vadd.f32 %v1411, 1e-05
      %v1420 = vadd.f32 %v1412, 1e-05
      %v1421 = vadd.f32 %v1413, 1e-05
      %v1422 = vadd.f32 %v1414, 1e-05
      %v1423 = vadd.f32 %v1415, 1e-05
      %v1424 = vadd.f32 %v1416, 1e-05
      %v1425 = vadd.f32 %v1417, 1e-05
      %v1426 = vadd.f32 %v1418, 1e-05
      %v1427 = vrsqrt.pop %v1419
      %v1428 = vrsqrt.pop %v1420
      %v1429 = vrsqrt.pop %v1421
      %v1430 = vrsqrt.pop %v1422
      %v1431 = vrsqrt.pop %v1423
      %v1432 = vrsqrt.pop %v1424
      %v1433 = vrsqrt.pop %v1425
      %v1434 = vrsqrt.pop %v1426
      %v1435 = vmul.f32 %v1371, %v1427
      %v1436 = vmul.f32 %v1372, %v1428
      %v1437 = vmul.f32 %v1373, %v1429
      %v1438 = vmul.f32 %v1374, %v1430
      %v1439 = vmul.f32 %v1375, %v1431
      %v1440 = vmul.f32 %v1376, %v1432
      %v1441 = vmul.f32 %v1377, %v1433
      %v1442 = vmul.f32 %v1378, %v1434
      %v1444 = vlaneseq
      %v1445 = vshrl.u32 %v1444, 7
      %v1446 = vsub.s32 0, %v1445
      %v1447 = vrot.slane %v1337, %v1446
      %v1449 = vmul.f32 %v1435, %v1447
      %v1450 = vmul.f32 %v1436, %v1447
      %v1451 = vmul.f32 %v1437, %v1447
      %v1452 = vmul.f32 %v1438, %v1447
      %v1453 = vmul.f32 %v1439, %v1447
      %v1454 = vmul.f32 %v1440, %v1447
      %v1455 = vmul.f32 %v1441, %v1447
      %v1456 = vmul.f32 %v1442, %v1447
      %v1458 = vlaneseq
      %v1459 = vshrl.u32 %v1458, 7
      %v1460 = vsub.s32 0, %v1459
      %v1461 = vrot.slane %v1338, %v1460
      %v1463 = vadd.f32 %v1449, %v1461
      %v1464 = vadd.f32 %v1450, %v1461
      %v1465 = vadd.f32 %v1451, %v1461
      %v1466 = vadd.f32 %v1452, %v1461
      %v1467 = vadd.f32 %v1453, %v1461
      %v1468 = vadd.f32 %v1454, %v1461
      %v1469 = vadd.f32 %v1455, %v1461
      %v1470 = vadd.f32 %v1456, %v1461
      %v1471 = vpack.c.bf16 %v1464, %v1463
      %v1472 = vpack.c.bf16 %v1466, %v1465
      %v1473 = vpack.c.bf16 %v1468, %v1467
      %v1474 = vpack.c.bf16 %v1470, %v1469
      %v1475 = vld [vmem:[%s10] sm:$0xf]
      %v1476 = vld [vmem:[%s10 + $0x4] sm:$0xf]
      %v1477 = vld [vmem:[%s10 + $0x8] sm:$0xf]
      %v1478 = vld [vmem:[%s10 + $0xc] sm:$0xf]
      %v1479 = vld [vmem:[%s11] sm:$0x1]
      %v1481 = vlaneseq
      %v1482 = vshrl.u32 %v1481, 7
      %v1483 = vsub.s32 0, %v1482
      %v1484 = vrot.slane %v1479, %v1483
      %v1490 = vunpack.c.l.b16 %v1475
      %v1491 = vunpack.c.l.b16 %v1476
      %v1492 = vunpack.c.l.b16 %v1477
      %v1493 = vunpack.c.l.b16 %v1478
      %v1494 = vpack.c.b16 %v1491, %v1490
      %v1495 = vpack.c.b16 %v1493, %v1492
      %v1499 = vsel %vm479, %v1471, 0
      %v1502 = vsel %vm479, %v1472, 0
      %v1505 = vsel %vm479, %v1473, 0
      %v1508 = vsel %vm479, %v1474, 0
      %1510 = vmatprep.subr.bf16.mxu0 0
      %1511 = vmatpush1.bf16.msra.mxu0 %v1494
      %1512 = vmatprep.subr.bf16.mxu0 0
      %1513 = vmatpush1.bf16.msra.mxu0 %v1495
      %1514 = vmatprep.subr.bf16.mxu0 0
      %1515 = vmatpush1.bf16.msra.mxu0 0
      %1516 = vmatprep.subr.bf16.mxu0 0
      %1517 = vmatpush1.bf16.msra.mxu0 0
      %1518 = vmatprep.subr.bf16.mxu0 0
      %1519 = vmatpush1.bf16.msra.mxu0 0
      %1520 = vmatprep.subr.bf16.mxu0 0
      %1521 = vmatpush1.bf16.msra.mxu0 0
      %1522 = vmatprep.subr.bf16.mxu0 0
      %1523 = vmatpush1.bf16.msra.mxu0 0
      %1524 = vmatprep.subr.bf16.mxu0 0
      %1525 = vmatpush1.bf16.msra.mxu0 0
      %1526 = vmatprep.subr.bf16.mxu0 0
      %1527 = vmatpush1.bf16.msra.mxu0 0
      %1528 = vmatprep.subr.bf16.mxu0 0
      %1529 = vmatpush1.bf16.msra.mxu0 0
      %1530 = vmatprep.subr.bf16.mxu0 0
      %1531 = vmatpush1.bf16.msra.mxu0 0
      %1532 = vmatprep.subr.bf16.mxu0 0
      %1533 = vmatpush1.bf16.msra.mxu0 0
      %1534 = vmatprep.subr.bf16.mxu0 0
      %1535 = vmatpush1.bf16.msra.mxu0 0
      %1536 = vmatprep.subr.bf16.mxu0 0
      %1537 = vmatpush1.bf16.msra.mxu0 0
      %1538 = vmatprep.subr.bf16.mxu0 0
      %1539 = vmatpush1.bf16.msra.mxu0 0
      %1540 = vmatprep.subr.bf16.mxu0 0
      %1541 = vmatpush1.bf16.msra.mxu0 0
      %1542 = vmatprep.mubr.bf16.mxu0 0
      %1543 = vmatmul.mubr.bf16.gmra.mrb[0].mxu0 %v1499
      %v1544 = vpop.f32.mrb[0].mxu0
      %v1545 = vadd.f32 %v1484, %v1544
      %v1546 = vpop.f32.mrb[0].mxu0
      %v1547 = vpop.f32.mrb[0].mxu0
      %v1548 = vadd.f32 %v1484, %v1547
      %v1549 = vpop.f32.mrb[0].mxu0
      %1550 = vmatprep.mubr.bf16.mxu0 0
      %1551 = vmatmul.mubr.bf16.gmra.mrb[0].mxu0 %v1502
      %v1552 = vpop.f32.mrb[0].mxu0
      %v1553 = vadd.f32 %v1484, %v1552
      %v1554 = vpop.f32.mrb[0].mxu0
      %v1555 = vpop.f32.mrb[0].mxu0
      %v1556 = vadd.f32 %v1484, %v1555
      %v1557 = vpop.f32.mrb[0].mxu0
      %1558 = vmatprep.mubr.bf16.mxu0 0
      %1559 = vmatmul.mubr.bf16.gmra.mrb[0].mxu0 %v1505
      %v1560 = vpop.f32.mrb[0].mxu0
      %v1561 = vadd.f32 %v1484, %v1560
      %v1562 = vpop.f32.mrb[0].mxu0
      %v1563 = vpop.f32.mrb[0].mxu0
      %v1564 = vadd.f32 %v1484, %v1563
      %v1565 = vpop.f32.mrb[0].mxu0
      %1566 = vmatprep.mubr.bf16.mxu0 0
      %1567 = vmatmul.mubr.bf16.gmra.mrb[0].mxu0 %v1508
      %v1568 = vpop.f32.mrb[0].mxu0
      %v1569 = vadd.f32 %v1484, %v1568
      %v1570 = vpop.f32.mrb[0].mxu0
      %v1571 = vpop.f32.mrb[0].mxu0
      %v1572 = vadd.f32 %v1484, %v1571
      %v1573 = vpop.f32.mrb[0].mxu0
      %1574 = vdwg.mxu0
      %v1575 = vmul.f32 %v1545, 0.5
      %v1576 = vmul.f32 %v1548, 0.5
      %v1577 = vmul.f32 %v1553, 0.5
      %v1578 = vmul.f32 %v1556, 0.5
      %v1579 = vmul.f32 %v1561, 0.5
      %v1580 = vmul.f32 %v1564, 0.5
      %v1581 = vmul.f32 %v1569, 0.5
      %v1582 = vmul.f32 %v1572, 0.5
      %v1583 = vmul.f32 %v1545, 0.70710677
      %v1584 = vmul.f32 %v1548, 0.70710677
      %v1585 = vmul.f32 %v1553, 0.70710677
      %v1586 = vmul.f32 %v1556, 0.70710677
      %v1587 = vmul.f32 %v1561, 0.70710677
      %v1588 = vmul.f32 %v1564, 0.70710677
      %v1589 = vmul.f32 %v1569, 0.70710677
      %v1590 = vmul.f32 %v1572, 0.70710677
      %vm1591 = vcmp.ge.f32.partialorder %v1583, 0.0
      %vm1592 = vcmp.ge.f32.partialorder %v1584, 0.0
      %vm1593 = vcmp.ge.f32.partialorder %v1585, 0.0
      %vm1594 = vcmp.ge.f32.partialorder %v1586, 0.0
      %vm1595 = vcmp.ge.f32.partialorder %v1587, 0.0
      %vm1596 = vcmp.ge.f32.partialorder %v1588, 0.0
      %vm1597 = vcmp.ge.f32.partialorder %v1589, 0.0
      %vm1598 = vcmp.ge.f32.partialorder %v1590, 0.0
      %v1599 = vsel %vm1591, 1.0, -1.0
      %v1600 = vsel %vm1592, 1.0, -1.0
      %v1601 = vsel %vm1593, 1.0, -1.0
      %v1602 = vsel %vm1594, 1.0, -1.0
      %v1603 = vsel %vm1595, 1.0, -1.0
      %v1604 = vsel %vm1596, 1.0, -1.0
      %v1605 = vsel %vm1597, 1.0, -1.0
      %v1606 = vsel %vm1598, 1.0, -1.0
      %v1607 = vand.u32 2147483647, %v1583
      %v1608 = vand.u32 2147483647, %v1584
      %v1609 = vand.u32 2147483647, %v1585
      %v1610 = vand.u32 2147483647, %v1586
      %v1611 = vand.u32 2147483647, %v1587
      %v1612 = vand.u32 2147483647, %v1588
      %v1613 = vand.u32 2147483647, %v1589
      %v1614 = vand.u32 2147483647, %v1590
      %v1615 = vmul.f32 %v1607, 0.3275911
      %v1616 = vmul.f32 %v1608, 0.3275911
      %v1617 = vmul.f32 %v1609, 0.3275911
      %v1618 = vmul.f32 %v1610, 0.3275911
      %v1619 = vmul.f32 %v1611, 0.3275911
      %v1620 = vmul.f32 %v1612, 0.3275911
      %v1621 = vmul.f32 %v1613, 0.3275911
      %v1622 = vmul.f32 %v1614, 0.3275911
      %v1623 = vadd.f32 %v1615, 1.0
      %v1624 = vadd.f32 %v1616, 1.0
      %v1625 = vadd.f32 %v1617, 1.0
      %v1626 = vadd.f32 %v1618, 1.0
      %v1627 = vadd.f32 %v1619, 1.0
      %v1628 = vadd.f32 %v1620, 1.0
      %v1629 = vadd.f32 %v1621, 1.0
      %v1630 = vadd.f32 %v1622, 1.0
      %v1631 = vrcp.pop %v1623
      %v1632 = vmul.f32 1.0, %v1631
      %v1633 = vrcp.pop %v1624
      %v1634 = vmul.f32 1.0, %v1633
      %v1635 = vrcp.pop %v1625
      %v1636 = vmul.f32 1.0, %v1635
      %v1637 = vrcp.pop %v1626
      %v1638 = vmul.f32 1.0, %v1637
      %v1639 = vrcp.pop %v1627
      %v1640 = vmul.f32 1.0, %v1639
      %v1641 = vrcp.pop %v1628
      %v1642 = vmul.f32 1.0, %v1641
      %v1643 = vrcp.pop %v1629
      %v1644 = vmul.f32 1.0, %v1643
      %v1645 = vrcp.pop %v1630
      %v1646 = vmul.f32 1.0, %v1645
      %v1647 = vmul.f32 %v1632, 1.0614054
      %v1648 = vmul.f32 %v1634, 1.0614054
      %v1649 = vmul.f32 %v1636, 1.0614054
      %v1650 = vmul.f32 %v1638, 1.0614054
      %v1651 = vmul.f32 %v1640, 1.0614054
      %v1652 = vmul.f32 %v1642, 1.0614054
      %v1653 = vmul.f32 %v1644, 1.0614054
      %v1654 = vmul.f32 %v1646, 1.0614054
      %v1655 = vadd.f32 %v1647, -1.4531521
      %v1656 = vadd.f32 %v1648, -1.4531521
      %v1657 = vadd.f32 %v1649, -1.4531521
      %v1658 = vadd.f32 %v1650, -1.4531521
      %v1659 = vadd.f32 %v1651, -1.4531521
      %v1660 = vadd.f32 %v1652, -1.4531521
      %v1661 = vadd.f32 %v1653, -1.4531521
      %v1662 = vadd.f32 %v1654, -1.4531521
      %v1663 = vmul.f32 %v1655, %v1632
      %v1664 = vmul.f32 %v1656, %v1634
      %v1665 = vmul.f32 %v1657, %v1636
      %v1666 = vmul.f32 %v1658, %v1638
      %v1667 = vmul.f32 %v1659, %v1640
      %v1668 = vmul.f32 %v1660, %v1642
      %v1669 = vmul.f32 %v1661, %v1644
      %v1670 = vmul.f32 %v1662, %v1646
      %v1671 = vadd.f32 %v1663, 1.4214138
      %v1672 = vadd.f32 %v1664, 1.4214138
      %v1673 = vadd.f32 %v1665, 1.4214138
      %v1674 = vadd.f32 %v1666, 1.4214138
      %v1675 = vadd.f32 %v1667, 1.4214138
      %v1676 = vadd.f32 %v1668, 1.4214138
      %v1677 = vadd.f32 %v1669, 1.4214138
      %v1678 = vadd.f32 %v1670, 1.4214138
      %v1679 = vmul.f32 %v1671, %v1632
      %v1680 = vmul.f32 %v1672, %v1634
      %v1681 = vmul.f32 %v1673, %v1636
      %v1682 = vmul.f32 %v1674, %v1638
      %v1683 = vmul.f32 %v1675, %v1640
      %v1684 = vmul.f32 %v1676, %v1642
      %v1685 = vmul.f32 %v1677, %v1644
      %v1686 = vmul.f32 %v1678, %v1646
      %v1687 = vadd.f32 %v1679, -0.28449672
      %v1688 = vadd.f32 %v1680, -0.28449672
      %v1689 = vadd.f32 %v1681, -0.28449672
      %v1690 = vadd.f32 %v1682, -0.28449672
      %v1691 = vadd.f32 %v1683, -0.28449672
      %v1692 = vadd.f32 %v1684, -0.28449672
      %v1693 = vadd.f32 %v1685, -0.28449672
      %v1694 = vadd.f32 %v1686, -0.28449672
      %v1695 = vmul.f32 %v1687, %v1632
      %v1696 = vmul.f32 %v1688, %v1634
      %v1697 = vmul.f32 %v1689, %v1636
      %v1698 = vmul.f32 %v1690, %v1638
      %v1699 = vmul.f32 %v1691, %v1640
      %v1700 = vmul.f32 %v1692, %v1642
      %v1701 = vmul.f32 %v1693, %v1644
      %v1702 = vmul.f32 %v1694, %v1646
      %v1703 = vadd.f32 %v1695, 0.2548296
      %v1704 = vadd.f32 %v1696, 0.2548296
      %v1705 = vadd.f32 %v1697, 0.2548296
      %v1706 = vadd.f32 %v1698, 0.2548296
      %v1707 = vadd.f32 %v1699, 0.2548296
      %v1708 = vadd.f32 %v1700, 0.2548296
      %v1709 = vadd.f32 %v1701, 0.2548296
      %v1710 = vadd.f32 %v1702, 0.2548296
      %v1711 = vmul.f32 %v1703, %v1632
      %v1712 = vmul.f32 %v1704, %v1634
      %v1713 = vmul.f32 %v1705, %v1636
      %v1714 = vmul.f32 %v1706, %v1638
      %v1715 = vmul.f32 %v1707, %v1640
      %v1716 = vmul.f32 %v1708, %v1642
      %v1717 = vmul.f32 %v1709, %v1644
      %v1718 = vmul.f32 %v1710, %v1646
      %v1719 = vsub.f32 0.0, %v1607
      %v1720 = vsub.f32 0.0, %v1608
      %v1721 = vsub.f32 0.0, %v1609
      %v1722 = vsub.f32 0.0, %v1610
      %v1723 = vsub.f32 0.0, %v1611
      %v1724 = vsub.f32 0.0, %v1612
      %v1725 = vsub.f32 0.0, %v1613
      %v1726 = vsub.f32 0.0, %v1614
      %v1727 = vmul.f32 %v1719, %v1607
      %v1728 = vmul.f32 %v1720, %v1608
      %v1729 = vmul.f32 %v1721, %v1609
      %v1730 = vmul.f32 %v1722, %v1610
      %v1731 = vmul.f32 %v1723, %v1611
      %v1732 = vmul.f32 %v1724, %v1612
      %v1733 = vmul.f32 %v1725, %v1613
      %v1734 = vmul.f32 %v1726, %v1614
      %v1735 = vmul.f32 %v1727, 1.442695
      %v1736 = vpow.pop %v1735
      %v1737 = vmul.f32 %v1728, 1.442695
      %v1738 = vpow.pop %v1737
      %v1739 = vmul.f32 %v1729, 1.442695
      %v1740 = vpow.pop %v1739
      %v1741 = vmul.f32 %v1730, 1.442695
      %v1742 = vpow.pop %v1741
      %v1743 = vmul.f32 %v1731, 1.442695
      %v1744 = vpow.pop %v1743
      %v1745 = vmul.f32 %v1732, 1.442695
      %v1746 = vpow.pop %v1745
      %v1747 = vmul.f32 %v1733, 1.442695
      %v1748 = vpow.pop %v1747
      %v1749 = vmul.f32 %v1734, 1.442695
      %v1750 = vpow.pop %v1749
      %v1751 = vmul.f32 %v1711, %v1736
      %v1752 = vmul.f32 %v1712, %v1738
      %v1753 = vmul.f32 %v1713, %v1740
      %v1754 = vmul.f32 %v1714, %v1742
      %v1755 = vmul.f32 %v1715, %v1744
      %v1756 = vmul.f32 %v1716, %v1746
      %v1757 = vmul.f32 %v1717, %v1748
      %v1758 = vmul.f32 %v1718, %v1750
      %v1759 = vsub.f32 1.0, %v1751
      %v1760 = vsub.f32 1.0, %v1752
      %v1761 = vsub.f32 1.0, %v1753
      %v1762 = vsub.f32 1.0, %v1754
      %v1763 = vsub.f32 1.0, %v1755
      %v1764 = vsub.f32 1.0, %v1756
      %v1765 = vsub.f32 1.0, %v1757
      %v1766 = vsub.f32 1.0, %v1758
      %v1767 = vmul.f32 %v1599, %v1759
      %v1768 = vmul.f32 %v1600, %v1760
      %v1769 = vmul.f32 %v1601, %v1761
      %v1770 = vmul.f32 %v1602, %v1762
      %v1771 = vmul.f32 %v1603, %v1763
      %v1772 = vmul.f32 %v1604, %v1764
      %v1773 = vmul.f32 %v1605, %v1765
      %v1774 = vmul.f32 %v1606, %v1766
      %v1775 = vadd.f32 %v1767, 1.0
      %v1776 = vadd.f32 %v1768, 1.0
      %v1777 = vadd.f32 %v1769, 1.0
      %v1778 = vadd.f32 %v1770, 1.0
      %v1779 = vadd.f32 %v1771, 1.0
      %v1780 = vadd.f32 %v1772, 1.0
      %v1781 = vadd.f32 %v1773, 1.0
      %v1782 = vadd.f32 %v1774, 1.0
      %v1783 = vmul.f32 %v1575, %v1775
      %v1784 = vmul.f32 %v1576, %v1776
      %v1785 = vmul.f32 %v1577, %v1777
      %v1786 = vmul.f32 %v1578, %v1778
      %v1787 = vmul.f32 %v1579, %v1779
      %v1788 = vmul.f32 %v1580, %v1780
      %v1789 = vmul.f32 %v1581, %v1781
      %v1790 = vmul.f32 %v1582, %v1782
      %v1791 = vpack.c.bf16 %v1784, %v1783
      %v1792 = vpack.c.bf16 %v1786, %v1785
      %v1793 = vpack.c.bf16 %v1788, %v1787
      %v1794 = vpack.c.bf16 %v1790, %v1789
      %v1795 = vld [vmem:[%s12] sm:$0xf]
      %v1796 = vld [vmem:[%s12 + $0x4] sm:$0xf]
      %v1797 = vld [vmem:[%s12 + $0x8] sm:$0xf]
      %v1798 = vld [vmem:[%s12 + $0xc] sm:$0xf]
      %v1799 = vld [vmem:[%s12 + $0x10] sm:$0xf]
      %v1800 = vld [vmem:[%s12 + $0x14] sm:$0xf]
      %v1801 = vld [vmem:[%s12 + $0x18] sm:$0xf]
      %v1802 = vld [vmem:[%s12 + $0x1c] sm:$0xf]
      %v1803 = vld [vmem:[%s12 + $0x20] sm:$0xf]
      %v1804 = vld [vmem:[%s12 + $0x24] sm:$0xf]
      %v1805 = vld [vmem:[%s12 + $0x28] sm:$0xf]
      %v1806 = vld [vmem:[%s12 + $0x2c] sm:$0xf]
      %v1807 = vld [vmem:[%s12 + $0x30] sm:$0xf]
      %v1808 = vld [vmem:[%s12 + $0x34] sm:$0xf]
      %v1809 = vld [vmem:[%s12 + $0x38] sm:$0xf]
      %v1810 = vld [vmem:[%s12 + $0x3c] sm:$0xf]
      %v1811 = vld [vmem:[%s13] sm:$0x1]
      %v1813 = vlaneseq
      %v1814 = vshrl.u32 %v1813, 7
      %v1815 = vsub.s32 0, %v1814
      %v1816 = vrot.slane %v1811, %v1815
      %v1834 = vunpack.c.l.b16 %v1795
      %v1835 = vunpack.c.l.b16 %v1796
      %v1836 = vunpack.c.l.b16 %v1797
      %v1837 = vunpack.c.l.b16 %v1798
      %v1838 = vunpack.c.l.b16 %v1799
      %v1839 = vunpack.c.l.b16 %v1800
      %v1840 = vunpack.c.l.b16 %v1801
      %v1841 = vunpack.c.l.b16 %v1802
      %v1842 = vunpack.c.l.b16 %v1803
      %v1843 = vunpack.c.l.b16 %v1804
      %v1844 = vunpack.c.l.b16 %v1805
      %v1845 = vunpack.c.l.b16 %v1806
      %v1846 = vunpack.c.l.b16 %v1807
      %v1847 = vunpack.c.l.b16 %v1808
      %v1848 = vunpack.c.l.b16 %v1809
      %v1849 = vunpack.c.l.b16 %v1810
      %v1850 = vpack.c.b16 %v1835, %v1834
      %v1851 = vpack.c.b16 %v1837, %v1836
      %v1852 = vpack.c.b16 %v1839, %v1838
      %v1853 = vpack.c.b16 %v1841, %v1840
      %v1854 = vpack.c.b16 %v1843, %v1842
      %v1855 = vpack.c.b16 %v1845, %v1844
      %v1856 = vpack.c.b16 %v1847, %v1846
      %v1857 = vpack.c.b16 %v1849, %v1848
      %1866 = vmatprep.subr.bf16.mxu0 0
      %1867 = vmatpush1.bf16.msra.mxu0 %v1850
      %1868 = vmatprep.subr.bf16.mxu0 0
      %1869 = vmatpush1.bf16.msra.mxu0 %v1851
      %1870 = vmatprep.subr.bf16.mxu0 0
      %1871 = vmatpush1.bf16.msra.mxu0 %v1852
      %1872 = vmatprep.subr.bf16.mxu0 0
      %1873 = vmatpush1.bf16.msra.mxu0 %v1853
      %1874 = vmatprep.subr.bf16.mxu0 0
      %1875 = vmatpush1.bf16.msra.mxu0 %v1854
      %1876 = vmatprep.subr.bf16.mxu0 0
      %1877 = vmatpush1.bf16.msra.mxu0 %v1855
      %1878 = vmatprep.subr.bf16.mxu0 0
      %1879 = vmatpush1.bf16.msra.mxu0 %v1856
      %1880 = vmatprep.subr.bf16.mxu0 0
      %1881 = vmatpush1.bf16.msra.mxu0 %v1857
      %1882 = vmatprep.subr.bf16.mxu0 0
      %1883 = vmatpush1.bf16.msra.mxu0 0
      %1884 = vmatprep.subr.bf16.mxu0 0
      %1885 = vmatpush1.bf16.msra.mxu0 0
      %1886 = vmatprep.subr.bf16.mxu0 0
      %1887 = vmatpush1.bf16.msra.mxu0 0
      %1888 = vmatprep.subr.bf16.mxu0 0
      %1889 = vmatpush1.bf16.msra.mxu0 0
      %1890 = vmatprep.subr.bf16.mxu0 0
      %1891 = vmatpush1.bf16.msra.mxu0 0
      %1892 = vmatprep.subr.bf16.mxu0 0
      %1893 = vmatpush1.bf16.msra.mxu0 0
      %1894 = vmatprep.subr.bf16.mxu0 0
      %1895 = vmatpush1.bf16.msra.mxu0 0
      %1896 = vmatprep.subr.bf16.mxu0 0
      %1897 = vmatpush1.bf16.msra.mxu0 0
      %1898 = vmatprep.mubr.bf16.mxu0 0
      %1899 = vmatmul.mubr.bf16.gmra.mrb[0].mxu0 %v1791
      %v1900 = vpop.f32.mrb[0].mxu0
      %v1901 = vadd.f32 %v1816, %v1900
      %v1902 = vpop.f32.mrb[0].mxu0
      %v1903 = vpop.f32.mrb[0].mxu0
      %v1904 = vadd.f32 %v1816, %v1903
      %v1905 = vpop.f32.mrb[0].mxu0
      %1906 = vmatprep.mubr.bf16.mxu0 0
      %1907 = vmatmul.mubr.bf16.gmra.mrb[0].mxu0 %v1792
      %v1908 = vpop.f32.mrb[0].mxu0
      %v1909 = vadd.f32 %v1816, %v1908
      %v1910 = vpop.f32.mrb[0].mxu0
      %v1911 = vpop.f32.mrb[0].mxu0
      %v1912 = vadd.f32 %v1816, %v1911
      %v1913 = vpop.f32.mrb[0].mxu0
      %1914 = vmatprep.mubr.bf16.mxu0 0
      %1915 = vmatmul.mubr.bf16.gmra.mrb[0].mxu0 %v1793
      %v1916 = vpop.f32.mrb[0].mxu0
      %v1917 = vadd.f32 %v1816, %v1916
      %v1918 = vpop.f32.mrb[0].mxu0
      %v1919 = vpop.f32.mrb[0].mxu0
      %v1920 = vadd.f32 %v1816, %v1919
      %v1921 = vpop.f32.mrb[0].mxu0
      %1922 = vmatprep.mubr.bf16.mxu0 0
      %1923 = vmatmul.mubr.bf16.gmra.mrb[0].mxu0 %v1794
      %v1924 = vpop.f32.mrb[0].mxu0
      %v1925 = vadd.f32 %v1816, %v1924
      %v1926 = vpop.f32.mrb[0].mxu0
      %v1927 = vpop.f32.mrb[0].mxu0
      %v1928 = vadd.f32 %v1816, %v1927
      %v1929 = vpop.f32.mrb[0].mxu0
      %1930 = vdwg.mxu0
      %v1931 = vadd.f32 %v1329, %v1901
      %v1932 = vadd.f32 %v1330, %v1904
      %v1933 = vadd.f32 %v1331, %v1909
      %v1934 = vadd.f32 %v1332, %v1912
      %v1935 = vadd.f32 %v1333, %v1917
      %v1936 = vadd.f32 %v1334, %v1920
      %v1937 = vadd.f32 %v1335, %v1925
      %v1938 = vadd.f32 %v1336, %v1928
      %1939 = vst.msk [vmem:[%s467] sm:$0xff] %vm479, %v1931
      %1940 = vst.msk [vmem:[%s467 + $0x8] sm:$0xff] %vm479, %v1932
      %1941 = vst.msk [vmem:[%s467 + $0x10] sm:$0xff] %vm479, %v1933
      %1942 = vst.msk [vmem:[%s467 + $0x18] sm:$0xff] %vm479, %v1934
      %1943 = vst.msk [vmem:[%s467 + $0x20] sm:$0xff] %vm479, %v1935
      %1944 = vst.msk [vmem:[%s467 + $0x28] sm:$0xff] %vm479, %v1936
      %1945 = vst.msk [vmem:[%s467 + $0x30] sm:$0xff] %vm479, %v1937
      %1946 = vst.msk [vmem:[%s467 + $0x38] sm:$0xff] %vm479, %v1938
      %p1947 = scmp.lt.s32.totalorder %s25, 1
      %s1948 = scalar_select %p1947, %s25, 1
      %s1949 = smul.addr %s1948, 8
      %s1950 = smul.addr %s1949, 8
      %s1951 = scalar_lea.vmem %s14, %s1950
      // Predicated region
      $region77: #{channel_transformer_layer.2} parent=75 // pred_check
        %p1952 = pneg %p342
      $region78: #{channel_transformer_layer.2} parent=75 // pred_check_branch
        %1954 = sbr.rel (%p1952) target = $region80
      $region79: #{channel_transformer_layer.2} parent=75 // pred_region
        _
      $region80: #{channel_transformer_layer.2} parent=75 // pred_fallthru
        _
    $region76: #{channel_transformer_layer.2} parent=5 // pred_fallthru
      _
    %p1955 = scmp.le.s32.totalorder 2, %s20
    // Predicated region
    $region81: #{channel_transformer_layer.2} parent=5 // pred_check
      %p1956 = pneg %p1955
    $region82: #{channel_transformer_layer.2} parent=5 // pred_check_branch
      %1958 = sbr.rel (%p1956) target = $region84
    $region83: #{channel_transformer_layer.2} parent=5 // pred_region
      %s1959 = ssub.s32 %s20, 2
      // Predicated region
      $region85: #{channel_transformer_layer.2} parent=83 // pred_check
        %p1960 = pneg %p348
      $region86: #{channel_transformer_layer.2} parent=83 // pred_check_branch
        %1962 = sbr.rel (%p1960) target = $region88
      $region87: #{channel_transformer_layer.2} parent=83 // pred_region
        %p1963 = scmp.lt.s32.totalorder %s26, 1
        %s1964 = scalar_select %p1963, %s26, 1
        %s1965 = smul.addr %s1964, 8
        %s1966 = smul.addr %s1965, 8
        %s1967 = scalar_lea.vmem %s14, %s1966
      $region88: #{channel_transformer_layer.2} parent=83 // pred_fallthru
        _
    $region84: #{channel_transformer_layer.2} parent=5 // pred_fallthru
      _
  $region6: #{channel_transformer_layer.2} parent=0 // loop_footer
    %s24 = sadd.s32 1, %s20
  $region7: #{channel_transformer_layer.2} parent=0 // loop_footer_branch
    %19 = sbr.rel target = $region3
  $region8: #{channel_transformer_layer.2} parent=0 // loop_exit
    _

</llo_original>
